<compile_context>
chip_gen: v5e
topology: v5e:2x2
jax: 0.10.0
libtpu: 0.0.40
codegen_flags: <defaults>
</compile_context>

<pallas_src>
import jax
import jax.numpy as jnp
from jax.experimental import pallas as pl
from jax.experimental.pallas import tpu as pltpu


def _round_up(x, m):
    return ((x + m - 1) // m) * m


def simple_attention_kernel(
    # scalar prefetch
    tok_ref,             # (B_pad*T_x,) int32 in SMEM: flattened token ids
    # inputs
    lens_ref,            # (TB, 1) int32
    qe_ref, qo_ref,      # (TB, 1, Eh) f32: query, even/odd embedding columns, pre-broadcast
    wc1e_ref, wc1o_ref,  # (Eh, H_pad) f32: classifier layer-1 weights, even/odd rows
    bc1_ref,             # (1, H_pad) f32
    wc2_ref,             # (H_pad, O_pad) f32
    bc2_ref,             # (1, O_pad) f32
    glove_ref,           # (V, Eh) uint32 in HBM: bf16 pairs packed into u32
    # outputs
    out_ref,             # (TB, O_pad) f32
    alpha_ref,           # (TB, T_a) f32   (lane-dense)
    # scratch
    xbuf,                # (TB*T_x, Eh) uint32 VMEM: gathered embedding rows
    gsem,                # DMA semaphore
):
    TB, _, Eh = qe_ref.shape
    n_rows = xbuf.shape[0]
    T_x = n_rows // TB
    T_a = alpha_ref.shape[1]

    i = pl.program_id(0)
    base = i * n_rows

    # ---- fused embedding gather: DMA the needed GloVe rows straight from HBM ----
    # TODO(synk): overlap this gather with the previous tile's compute (windowed / double-
    # buffered row DMAs) instead of start-all/wait-all within the step.
    @pl.loop(0, n_rows)
    def _start(r):
        pltpu.make_async_copy(glove_ref.at[tok_ref[base + r]], xbuf.at[r], gsem).start()

    @pl.loop(0, n_rows)
    def _wait(r):
        # every row copy has identical size, so n_rows waits <=> all copies completed
        pltpu.make_async_copy(glove_ref.at[0], xbuf.at[0], gsem).wait()

    # ---- unpack the bf16 pairs into f32 even/odd planes (VPU shift/mask + bitcast) ----
    w = xbuf[...]                                             # (TB*T_x, Eh) u32
    x_even = pltpu.bitcast(w << 16, jnp.float32)              # value of element 2j
    x_odd = pltpu.bitcast(w & jnp.uint32(0xFFFF0000), jnp.float32)  # value of element 2j+1
    x3e = x_even.reshape(TB, T_x, Eh)
    x3o = x_odd.reshape(TB, T_x, Eh)

    # ---- attention scores on the MXU: (TB,1,Eh).(TB,T,Eh) -> (TB,1,T), then dense 2D ----
    s3 = jnp.einsum('bqe,bte->bqt', qe_ref[...], x3e, preferred_element_type=jnp.float32)
    s3 = s3 + jnp.einsum('bqe,bte->bqt', qo_ref[...], x3o, preferred_element_type=jnp.float32)
    s2 = s3[:, 0, :]                                          # (TB, T_x)

    # ---- length mask + softmax over time, all on dense (TB, T_x) tiles ----
    # TODO(synk): a real sequence of length 0 yields NaNs here (same as the PyTorch module).
    pos = jax.lax.broadcasted_iota(jnp.int32, (TB, T_x), 1)
    valid = pos < lens_ref[...]                               # (TB,1) broadcasts to (TB,T_x)
    s2 = jnp.where(valid, s2, -jnp.inf)
    m = jnp.max(s2, axis=1, keepdims=True)
    e = jnp.exp(s2 - m)
    denom = jnp.sum(e, axis=1, keepdims=True)
    alpha2 = e / denom                                        # exact reciprocal

    if T_a > T_x:
        alpha_ref[...] = jnp.concatenate(
            [alpha2, jnp.zeros((TB, T_a - T_x), jnp.float32)], axis=1)
    else:
        alpha_ref[...] = alpha2                               # single lane-dense store

    # ---- attention-weighted time sum on the MXU ----
    a3 = alpha2.reshape(TB, 1, T_x)
    t_e = jnp.einsum('bqt,bte->bqe', a3, x3e, preferred_element_type=jnp.float32)[:, 0, :]
    t_o = jnp.einsum('bqt,bte->bqe', a3, x3o, preferred_element_type=jnp.float32)[:, 0, :]

    # ---- classifier MLP (layer-1 weights pre-split into even/odd embedding rows) ----
    hc = (jnp.dot(t_e, wc1e_ref[...], preferred_element_type=jnp.float32)
          + jnp.dot(t_o, wc1o_ref[...], preferred_element_type=jnp.float32)
          + bc1_ref[...])
    hc = jnp.maximum(hc, 0.0)
    out_ref[...] = jnp.dot(hc, wc2_ref[...], preferred_element_type=jnp.float32) + bc2_ref[...]


def _pick_batch_tile(B, T_x, Eh, xbuf_budget_bytes=8 * 1024 * 1024):
    """Batch tile from a VMEM budget for the gathered-row buffer; >=2 grid steps when possible."""
    per_row = T_x * Eh * 4                                    # bytes of gathered rows per batch elt
    tb = max(8, min(64, (xbuf_budget_bytes // per_row) // 8 * 8))
    b8 = _round_up(B, 8)
    if b8 >= 16 and tb > b8 // 2:
        tb = max(8, (b8 // 2) // 8 * 8)                       # v7x: keep both TensorCores busy
    return min(tb, b8)


def simple_attention(x_tokens, lengths, glove, params, *, batch_tile=None):
    B, T = x_tokens.shape
    V, E = glove.shape
    H = params["wc1"].shape[1]
    O = params["wc2"].shape[1]

    # ---- hoisted query MLP: q = W2 @ relu(W1 @ 1 + b1) + b2 (depends only on params) ----
    ones = jnp.ones((1, E), jnp.float32)
    hq = jnp.maximum(ones @ params["wq1"] + params["bq1"], 0.0)
    q = (hq @ params["wq2"] + params["bq2"])[0]               # (E,)

    # ---- padded sizes (zero padding keeps the math exact) ----
    E_pad = _round_up(E, 256)     # even/odd split -> each half a multiple of 128 lanes
    Eh = E_pad // 2
    H_pad = _round_up(H, 128)
    O_pad = _round_up(O, 128)
    T_x = _round_up(T, 8)         # time axis inside the kernel (sublane aligned)
    T_a = _round_up(T, 128)       # lane-dense alpha output width

    TB = batch_tile if batch_tile is not None else _pick_batch_tile(B, T_x, Eh)
    B_pad = _round_up(B, TB)

    # ---- tokens (scalar prefetch) / lengths (tiny batch-tiled block) ----
    tok = jnp.pad(x_tokens.astype(jnp.int32), ((0, B_pad - B), (0, T_x - T)))
    tok_flat = tok.reshape(B_pad * T_x)
    lens = jnp.pad(lengths.astype(jnp.int32), (0, B_pad - B), constant_values=1)
    lens2 = lens.reshape(B_pad, 1)

    # ---- GloVe in HBM as bf16, (even, odd) pairs packed into uint32 rows ----
    glove_bf16 = jnp.pad(glove.astype(jnp.bfloat16), ((0, 0), (0, E_pad - E)))
    g_u16 = jax.lax.bitcast_convert_type(glove_bf16, jnp.uint16)            # (V, E_pad)
    glove_u32 = (g_u16[:, 0::2].astype(jnp.uint32)
                 | (g_u16[:, 1::2].astype(jnp.uint32) << 16))               # (V, Eh)

    # ---- query / classifier params: padded, even/odd split, q pre-broadcast ----
    q_pad = jnp.pad(q.astype(jnp.float32), (0, E_pad - E))
    q_e = jnp.broadcast_to(q_pad[0::2].reshape(1, 1, Eh), (TB, 1, Eh))
    q_o = jnp.broadcast_to(q_pad[1::2].reshape(1, 1, Eh), (TB, 1, Eh))
    wc1 = jnp.pad(params["wc1"].astype(jnp.float32), ((0, E_pad - E), (0, H_pad - H)))
    wc1e, wc1o = wc1[0::2, :], wc1[1::2, :]
    bc1 = jnp.pad(params["bc1"].astype(jnp.float32), ((0, 0), (0, H_pad - H)))
    wc2 = jnp.pad(params["wc2"].astype(jnp.float32), ((0, H_pad - H), (0, O_pad - O)))
    bc2 = jnp.pad(params["bc2"].astype(jnp.float32), ((0, 0), (0, O_pad - O)))

    grid = (B_pad // TB,)

    in_specs = [
        pl.BlockSpec((TB, 1), lambda i, tok: (i, 0)),          # lengths: batch-tiled
        pl.BlockSpec((TB, 1, Eh), lambda i, tok: (0, 0, 0)),   # q even: resident
        pl.BlockSpec((TB, 1, Eh), lambda i, tok: (0, 0, 0)),   # q odd: resident
        pl.BlockSpec((Eh, H_pad), lambda i, tok: (0, 0)),      # wc1 even rows: resident
        pl.BlockSpec((Eh, H_pad), lambda i, tok: (0, 0)),      # wc1 odd rows: resident
        pl.BlockSpec((1, H_pad), lambda i, tok: (0, 0)),       # bc1
        pl.BlockSpec((H_pad, O_pad), lambda i, tok: (0, 0)),   # wc2
        pl.BlockSpec((1, O_pad), lambda i, tok: (0, 0)),       # bc2
        pl.BlockSpec(memory_space=pl.ANY),                     # glove: stays in HBM, DMA-gathered
    ]
    out_shapes = (
        jax.ShapeDtypeStruct((B_pad, O_pad), jnp.float32),
        jax.ShapeDtypeStruct((B_pad, T_a), jnp.float32),
    )
    out_specs = (
        pl.BlockSpec((TB, O_pad), lambda i, tok: (i, 0)),
        pl.BlockSpec((TB, T_a), lambda i, tok: (i, 0)),
    )
    scratch_shapes = [
        pltpu.VMEM((TB * T_x, Eh), jnp.uint32),                # gathered embedding rows
        pltpu.SemaphoreType.DMA,                               # gather DMA semaphore
    ]

    fn = pl.pallas_call(
        simple_attention_kernel,
        out_shape=out_shapes,
        grid_spec=pltpu.PrefetchScalarGridSpec(
            num_scalar_prefetch=1,
            grid=grid,
            in_specs=in_specs,
            out_specs=out_specs,
            scratch_shapes=scratch_shapes,
        ),
        compiler_params=pltpu.CompilerParams(
            dimension_semantics=("parallel",),                 # batch axis across v7x TCs
            vmem_limit_bytes=40 * 1024 * 1024,
        ),
    )
    out_p, alpha_p = fn(tok_flat, lens2, q_e, q_o, wc1e, wc1o, bc1, wc2, bc2, glove_u32)
    return out_p[:B, :O], alpha_p[:B, :T]


def reference(x_tokens, lengths, glove, params):
    x_emb = jnp.take(glove, x_tokens, axis=0).astype(jnp.float32)
    E = glove.shape[1]
    ones = jnp.ones((E,), jnp.float32)
    hq = jnp.maximum(ones @ params["wq1"] + params["bq1"][0], 0.0)
    q = hq @ params["wq2"] + params["bq2"][0]
    scores = jnp.sum(x_emb * q[None, None, :], axis=2)
    B, T = scores.shape
    valid = jnp.arange(T)[None, :] < lengths[:, None]
    scores = jnp.where(valid, scores, -jnp.inf)
    alpha = jax.nn.softmax(scores, axis=1)
    t_hat = jnp.sum(alpha[:, :, None] * x_emb, axis=1)
    hc = jnp.maximum(t_hat @ params["wc1"] + params["bc1"][0], 0.0)
    out = hc @ params["wc2"] + params["bc2"][0]
    return out, alpha


if __name__ == "__main__":
    # Small shapes consistent with the module's forward.
    VOCAB, E, H, O = 50, 32, 32, 4     # glove_embedding (VOCAB, E), dim_hidden H, dim_output O
    B, T = 2, 8

    key = jax.random.PRNGKey(0)
    keys = jax.random.split(key, 10)

    glove = jax.random.normal(keys[0], (VOCAB, E), dtype=jnp.float32)

    def init_w(k, shape):
        return 0.1 * jax.random.normal(k, shape, dtype=jnp.float32)

    params = {
        # query: Linear(E, H) -> ReLU -> Linear(H, E)
        "wq1": init_w(keys[1], (E, H)), "bq1": init_w(keys[2], (1, H)),
        "wq2": init_w(keys[3], (H, E)), "bq2": init_w(keys[4], (1, E)),
        # classifieur: Linear(E, H) -> ReLU -> Linear(H, O)
        "wc1": init_w(keys[5], (E, H)), "bc1": init_w(keys[6], (1, H)),
        "wc2": init_w(keys[7], (H, O)), "bc2": init_w(keys[8], (1, O)),
    }

    x_tokens = jax.random.randint(keys[9], (B, T), 0, VOCAB, dtype=jnp.int32)
    lengths = jnp.array([5, 8], dtype=jnp.int32)

    out, alpha = simple_attention(x_tokens, lengths, glove, params)
    out = jax.block_until_ready(out)
    alpha = jax.block_until_ready(alpha)

    # The kernel reads bf16-quantized embeddings (the perf review's bandwidth change), so:
    #  * tight check against a reference using the same bf16-rounded embeddings (kernel math);
    #  * loose check against the original f32 reference (quantization impact).
    glove_q = glove.astype(jnp.bfloat16).astype(jnp.float32)
    out_q, alpha_q = reference(x_tokens, lengths, glove_q, params)
    out_f, alpha_f = reference(x_tokens, lengths, glove, params)

    assert out.shape == (B, O) and alpha.shape == (B, T)
    assert jnp.allclose(out, out_q, atol=5e-3, rtol=5e-3)
    assert jnp.allclose(alpha, alpha_q, atol=5e-3, rtol=5e-3)
    assert jnp.allclose(out, out_f, atol=2e-2, rtol=2e-2)
    assert jnp.allclose(alpha, alpha_f, atol=2e-2, rtol=2e-2)

    print("KERNEL_OK")
</pallas_src>

<mosaic_0001>
module attributes {stable_mosaic.version = 11 : i64} {
  func.func @simple_attention_kernel(%arg0: i32, %arg1: memref<64xi32, #tpu.memory_space<smem>>, %arg2: memref<8x1xi32, #tpu.memory_space<vmem>>, %arg3: memref<8x1x128xf32, #tpu.memory_space<vmem>>, %arg4: memref<8x1x128xf32, #tpu.memory_space<vmem>>, %arg5: memref<128x128xf32, #tpu.memory_space<vmem>>, %arg6: memref<128x128xf32, #tpu.memory_space<vmem>>, %arg7: memref<1x128xf32, #tpu.memory_space<vmem>>, %arg8: memref<128x128xf32, #tpu.memory_space<vmem>>, %arg9: memref<1x128xf32, #tpu.memory_space<vmem>>, %arg10: memref<50x128xi32, #tpu.memory_space<any>>, %arg11: memref<8x128xf32, #tpu.memory_space<vmem>>, %arg12: memref<8x128xf32, #tpu.memory_space<vmem>>, %arg13: memref<64x128xi32, #tpu.memory_space<vmem>>, %arg14: memref<!tpu.dma_semaphore, #tpu.memory_space<semaphore_mem>>) attributes {dimension_semantics = [#tpu.dimension_semantics<parallel>], iteration_bounds = array<i64: 1>, scalar_prefetch = 1 : i64, scratch_operands = 2 : i64, tpu.core_type = #tpu.core_type<tc>, window_params = [{transform_indices = @transform_0, window_bounds = array<i64: 8, 1>}, {pipeline_mode = #tpu.pipeline_mode<synchronous>, transform_indices = @transform_1, window_bounds = array<i64: 8, 1, 128>}, {pipeline_mode = #tpu.pipeline_mode<synchronous>, transform_indices = @transform_2, window_bounds = array<i64: 8, 1, 128>}, {pipeline_mode = #tpu.pipeline_mode<synchronous>, transform_indices = @transform_3, window_bounds = array<i64: 128, 128>}, {pipeline_mode = #tpu.pipeline_mode<synchronous>, transform_indices = @transform_4, window_bounds = array<i64: 128, 128>}, {pipeline_mode = #tpu.pipeline_mode<synchronous>, transform_indices = @transform_5, window_bounds = array<i64: 1, 128>}, {pipeline_mode = #tpu.pipeline_mode<synchronous>, transform_indices = @transform_6, window_bounds = array<i64: 128, 128>}, {pipeline_mode = #tpu.pipeline_mode<synchronous>, transform_indices = @transform_7, window_bounds = array<i64: 1, 128>}, {}, {transform_indices = @transform_9, window_bounds = array<i64: 8, 128>}, {transform_indices = @transform_10, window_bounds = array<i64: 8, 128>}]} {
    %c64_i32 = arith.constant 64 : i32
    %0 = arith.muli %arg0, %c64_i32 : i32
    %c0_i32 = arith.constant 0 : i32
    %c64_i32_0 = arith.constant 64 : i32
    %1 = arith.addi %c0_i32, %c64_i32_0 : i32
    %c1_i32 = arith.constant 1 : i32
    scf.for %arg15 = %c0_i32 to %1 step %c1_i32  : i32 {
      %c1_i32_39 = arith.constant 1 : i32
      %57 = arith.muli %arg15, %c1_i32_39 : i32
      %c0_i32_40 = arith.constant 0 : i32
      %58 = arith.addi %c0_i32_40, %57 : i32
      %59 = arith.addi %0, %58 : i32
      %60 = arith.index_cast %59 : i32 to index
      %61 = memref.load %arg1[%60] : memref<64xi32, #tpu.memory_space<smem>>
      %c0_i32_41 = arith.constant 0 : i32
      %62 = tpu.memref_slice %arg10[%61, %c0_i32_41] : memref<50x128xi32, #tpu.memory_space<any>> -> memref<1x128xi32, #tpu.memory_space<any>>
      %63 = tpu.memref_squeeze %62 : memref<1x128xi32, #tpu.memory_space<any>> -> memref<128xi32, #tpu.memory_space<any>>
      %c0_i32_42 = arith.constant 0 : i32
      %64 = tpu.memref_slice %arg13[%58, %c0_i32_42] : memref<64x128xi32, #tpu.memory_space<vmem>> -> memref<1x128xi32, #tpu.memory_space<vmem>>
      %65 = tpu.memref_squeeze %64 : memref<1x128xi32, #tpu.memory_space<vmem>> -> memref<128xi32, #tpu.memory_space<vmem>>
      tpu.enqueue_dma source(%63 : memref<128xi32, #tpu.memory_space<any>>) target(%65 : memref<128xi32, #tpu.memory_space<vmem>>) target_semaphore(%arg14 : memref<!tpu.dma_semaphore, #tpu.memory_space<semaphore_mem>>)
    }
    %c64_i32_1 = arith.constant 64 : i32
    %c0_i32_2 = arith.constant 0 : i32
    %c64_i32_3 = arith.constant 64 : i32
    %2 = arith.addi %c0_i32_2, %c64_i32_3 : i32
    %c1_i32_4 = arith.constant 1 : i32
    scf.for %arg15 = %c0_i32_2 to %2 step %c1_i32_4  : i32 {
      %c0_i32_39 = arith.constant 0 : i32
      %c0_i32_40 = arith.constant 0 : i32
      %c0_i32_41 = arith.constant 0 : i32
      %57 = tpu.memref_slice %arg10[%c0_i32_39, %c0_i32_41] : memref<50x128xi32, #tpu.memory_space<any>> -> memref<1x128xi32, #tpu.memory_space<any>>
      %58 = tpu.memref_squeeze %57 : memref<1x128xi32, #tpu.memory_space<any>> -> memref<128xi32, #tpu.memory_space<any>>
      %c0_i32_42 = arith.constant 0 : i32
      %59 = tpu.memref_slice %arg13[%c0_i32_40, %c0_i32_42] : memref<64x128xi32, #tpu.memory_space<vmem>> -> memref<1x128xi32, #tpu.memory_space<vmem>>
      %60 = tpu.memref_squeeze %59 : memref<1x128xi32, #tpu.memory_space<vmem>> -> memref<128xi32, #tpu.memory_space<vmem>>
      tpu.wait_dma2 semaphore(%arg14 : memref<!tpu.dma_semaphore, #tpu.memory_space<semaphore_mem>>) src(%58 : memref<128xi32, #tpu.memory_space<any>>) dst(%60 : memref<128xi32, #tpu.memory_space<vmem>>)
    }
    %c0 = arith.constant 0 : index
    %c0_5 = arith.constant 0 : index
    %3 = vector.load %arg13[%c0, %c0_5] : memref<64x128xi32, #tpu.memory_space<vmem>>, vector<64x128xi32>
    %c16_i32 = arith.constant 16 : i32
    %4 = vector.broadcast %c16_i32 : i32 to vector<64x128xi32>
    %5 = arith.shli %3, %4 : vector<64x128xi32>
    %6 = tpu.bitcast %5 : vector<64x128xi32> -> vector<64x128xf32>
    %c-65536_i32 = arith.constant -65536 : i32
    %7 = vector.broadcast %c-65536_i32 : i32 to vector<64x128xi32>
    %8 = arith.andi %3, %7 : vector<64x128xi32>
    %9 = tpu.bitcast %8 : vector<64x128xi32> -> vector<64x128xf32>
    %10 = vector.shape_cast %6 : vector<64x128xf32> to vector<8x8x128xf32>
    %11 = vector.shape_cast %9 : vector<64x128xf32> to vector<8x8x128xf32>
    %c0_6 = arith.constant 0 : index
    %c0_7 = arith.constant 0 : index
    %c0_8 = arith.constant 0 : index
    %12 = vector.load %arg3[%c0_6, %c0_7, %c0_8] : memref<8x1x128xf32, #tpu.memory_space<vmem>>, vector<8x1x128xf32>
    "tpu.trace_start"() <{level = 10 : i32, message = "bqe,bte->bqt"}> : () -> ()
    %cst = arith.constant dense<0.000000e+00> : vector<8x1x8xf32>
    %13 = tpu.matmul %12, %10, %cst {dimension_numbers = #tpu.dot_dimension_numbers<[2], [2], [1], [1], [0, 0, 0, 1, 1, 1], [0], [0]>} : vector<8x1x128xf32>, vector<8x8x128xf32>, vector<8x1x8xf32> -> vector<8x1x8xf32>
    "tpu.trace_stop"() : () -> ()
    %c0_9 = arith.constant 0 : index
    %c0_10 = arith.constant 0 : index
    %c0_11 = arith.constant 0 : index
    %14 = vector.load %arg4[%c0_9, %c0_10, %c0_11] : memref<8x1x128xf32, #tpu.memory_space<vmem>>, vector<8x1x128xf32>
    "tpu.trace_start"() <{level = 10 : i32, message = "bqe,bte->bqt"}> : () -> ()
    %cst_12 = arith.constant dense<0.000000e+00> : vector<8x1x8xf32>
    %15 = tpu.matmul %14, %11, %cst_12 {dimension_numbers = #tpu.dot_dimension_numbers<[2], [2], [1], [1], [0, 0, 0, 1, 1, 1], [0], [0]>} : vector<8x1x128xf32>, vector<8x8x128xf32>, vector<8x1x8xf32> -> vector<8x1x8xf32>
    "tpu.trace_stop"() : () -> ()
    %16 = arith.addf %13, %15 : vector<8x1x8xf32>
    %17 = vector.shape_cast %16 : vector<8x1x8xf32> to vector<8x8xf32>
    %18 = tpu.iota {dimensions = array<i32: 1>} : vector<8x8xi32>
    %c0_13 = arith.constant 0 : index
    %c0_14 = arith.constant 0 : index
    %19 = vector.load %arg2[%c0_13, %c0_14] : memref<8x1xi32, #tpu.memory_space<vmem>>, vector<8x1xi32>
    %20 = vector.broadcast %19 : vector<8x1xi32> to vector<8x8xi32>
    %21 = arith.cmpi slt, %18, %20 : vector<8x8xi32>
    %cst_15 = arith.constant 0xFF800000 : f32
    %22 = vector.broadcast %cst_15 : f32 to vector<8x8xf32>
    %23 = arith.select %21, %17, %22 : vector<8x8xi1>, vector<8x8xf32>
    %cst_16 = arith.constant dense<0xFF800000> : vector<8xf32>
    %24 = vector.multi_reduction <maximumf>, %23, %cst_16 [1] : vector<8x8xf32> to vector<8xf32>
    %25 = vector.shape_cast %24 : vector<8xf32> to vector<8x1xf32>
    %26 = vector.broadcast %25 : vector<8x1xf32> to vector<8x8xf32>
    %27 = arith.subf %23, %26 : vector<8x8xf32>
    %28 = math.exp %27 : vector<8x8xf32>
    %cst_17 = arith.constant dense<0.000000e+00> : vector<8xf32>
    %29 = vector.multi_reduction <add>, %28, %cst_17 [1] : vector<8x8xf32> to vector<8xf32>
    %30 = vector.shape_cast %29 : vector<8xf32> to vector<8x1xf32>
    %31 = vector.broadcast %30 : vector<8x1xf32> to vector<8x8xf32>
    %32 = arith.divf %28, %31 : vector<8x8xf32>
    %cst_18 = arith.constant 0.000000e+00 : f32
    %33 = vector.broadcast %cst_18 : f32 to vector<8x120xf32>
    %34 = tpu.concatenate %32, %33 in 1 : vector<8x8xf32>, vector<8x120xf32> -> vector<8x128xf32>
    %c0_19 = arith.constant 0 : index
    %c0_20 = arith.constant 0 : index
    %35 = vector.load %arg12[%c0_19, %c0_20] : memref<8x128xf32, #tpu.memory_space<vmem>>, vector<8x128xf32>
    tpu.vector_store %arg12[%c0_19, %c0_20], %34 {strides = array<i32>} : memref<8x128xf32, #tpu.memory_space<vmem>>, vector<8x128xf32>,
    %36 = vector.shape_cast %32 : vector<8x8xf32> to vector<8x1x8xf32>
    "tpu.trace_start"() <{level = 10 : i32, message = "bqt,bte->bqe"}> : () -> ()
    %cst_21 = arith.constant dense<0.000000e+00> : vector<8x1x128xf32>
    %37 = tpu.matmul %36, %10, %cst_21 {dimension_numbers = #tpu.dot_dimension_numbers<[2], [1], [1], [2], [0, 0, 0, 1, 1, 2], [0], [0]>} : vector<8x1x8xf32>, vector<8x8x128xf32>, vector<8x1x128xf32> -> vector<8x1x128xf32>
    "tpu.trace_stop"() : () -> ()
    %38 = vector.shape_cast %37 : vector<8x1x128xf32> to vector<8x128xf32>
    "tpu.trace_start"() <{level = 10 : i32, message = "bqt,bte->bqe"}> : () -> ()
    %cst_22 = arith.constant dense<0.000000e+00> : vector<8x1x128xf32>
    %39 = tpu.matmul %36, %11, %cst_22 {dimension_numbers = #tpu.dot_dimension_numbers<[2], [1], [1], [2], [0, 0, 0, 1, 1, 2], [0], [0]>} : vector<8x1x8xf32>, vector<8x8x128xf32>, vector<8x1x128xf32> -> vector<8x1x128xf32>
    "tpu.trace_stop"() : () -> ()
    %40 = vector.shape_cast %39 : vector<8x1x128xf32> to vector<8x128xf32>
    %c0_23 = arith.constant 0 : index
    %c0_24 = arith.constant 0 : index
    %41 = vector.load %arg5[%c0_23, %c0_24] : memref<128x128xf32, #tpu.memory_space<vmem>>, vector<128x128xf32>
    %cst_25 = arith.constant dense<0.000000e+00> : vector<8x128xf32>
    %42 = tpu.matmul %38, %41, %cst_25 {dimension_numbers = #tpu.dot_dimension_numbers<[1], [0], [0], [1], [0, 0, 1, 1], [], []>} : vector<8x128xf32>, vector<128x128xf32>, vector<8x128xf32> -> vector<8x128xf32>
    %c0_26 = arith.constant 0 : index
    %c0_27 = arith.constant 0 : index
    %43 = vector.load %arg6[%c0_26, %c0_27] : memref<128x128xf32, #tpu.memory_space<vmem>>, vector<128x128xf32>
    %cst_28 = arith.constant dense<0.000000e+00> : vector<8x128xf32>
    %44 = tpu.matmul %40, %43, %cst_28 {dimension_numbers = #tpu.dot_dimension_numbers<[1], [0], [0], [1], [0, 0, 1, 1], [], []>} : vector<8x128xf32>, vector<128x128xf32>, vector<8x128xf32> -> vector<8x128xf32>
    %45 = arith.addf %42, %44 : vector<8x128xf32>
    %c0_29 = arith.constant 0 : index
    %c0_30 = arith.constant 0 : index
    %46 = vector.load %arg7[%c0_29, %c0_30] : memref<1x128xf32, #tpu.memory_space<vmem>>, vector<1x128xf32>
    %47 = vector.broadcast %46 : vector<1x128xf32> to vector<8x128xf32>
    %48 = arith.addf %45, %47 : vector<8x128xf32>
    %cst_31 = arith.constant 0.000000e+00 : f32
    %49 = vector.broadcast %cst_31 : f32 to vector<8x128xf32>
    %50 = arith.maximumf %48, %49 : vector<8x128xf32>
    %c0_32 = arith.constant 0 : index
    %c0_33 = arith.constant 0 : index
    %51 = vector.load %arg8[%c0_32, %c0_33] : memref<128x128xf32, #tpu.memory_space<vmem>>, vector<128x128xf32>
    %cst_34 = arith.constant dense<0.000000e+00> : vector<8x128xf32>
    %52 = tpu.matmul %50, %51, %cst_34 {dimension_numbers = #tpu.dot_dimension_numbers<[1], [0], [0], [1], [0, 0, 1, 1], [], []>} : vector<8x128xf32>, vector<128x128xf32>, vector<8x128xf32> -> vector<8x128xf32>
    %c0_35 = arith.constant 0 : index
    %c0_36 = arith.constant 0 : index
    %53 = vector.load %arg9[%c0_35, %c0_36] : memref<1x128xf32, #tpu.memory_space<vmem>>, vector<1x128xf32>
    %54 = vector.broadcast %53 : vector<1x128xf32> to vector<8x128xf32>
    %55 = arith.addf %52, %54 : vector<8x128xf32>
    %c0_37 = arith.constant 0 : index
    %c0_38 = arith.constant 0 : index
    %56 = vector.load %arg11[%c0_37, %c0_38] : memref<8x128xf32, #tpu.memory_space<vmem>>, vector<8x128xf32>
    tpu.vector_store %arg11[%c0_37, %c0_38], %55 {strides = array<i32>} : memref<8x128xf32, #tpu.memory_space<vmem>>, vector<8x128xf32>,
    return
  }
  func.func @transform_0(%arg0: i32, %arg1: memref<64xi32, #tpu.memory_space<smem>>) -> (i32, i32) {
    %c0_i32 = arith.constant 0 : i32
    %c0_i32_0 = arith.constant 0 : i32
    return %arg0, %c0_i32 : i32, i32
  }
  func.func @transform_1(%arg0: i32, %arg1: memref<64xi32, #tpu.memory_space<smem>>) -> (i32, i32, i32) {
    %c0_i32 = arith.constant 0 : i32
    %c0_i32_0 = arith.constant 0 : i32
    %c0_i32_1 = arith.constant 0 : i32
    %c0_i32_2 = arith.constant 0 : i32
    return %c0_i32, %c0_i32_0, %c0_i32_1 : i32, i32, i32
  }
  func.func @transform_2(%arg0: i32, %arg1: memref<64xi32, #tpu.memory_space<smem>>) -> (i32, i32, i32) {
    %c0_i32 = arith.constant 0 : i32
    %c0_i32_0 = arith.constant 0 : i32
    %c0_i32_1 = arith.constant 0 : i32
    %c0_i32_2 = arith.constant 0 : i32
    return %c0_i32, %c0_i32_0, %c0_i32_1 : i32, i32, i32
  }
  func.func @transform_3(%arg0: i32, %arg1: memref<64xi32, #tpu.memory_space<smem>>) -> (i32, i32) {
    %c0_i32 = arith.constant 0 : i32
    %c0_i32_0 = arith.constant 0 : i32
    %c0_i32_1 = arith.constant 0 : i32
    return %c0_i32, %c0_i32_0 : i32, i32
  }
  func.func @transform_4(%arg0: i32, %arg1: memref<64xi32, #tpu.memory_space<smem>>) -> (i32, i32) {
    %c0_i32 = arith.constant 0 : i32
    %c0_i32_0 = arith.constant 0 : i32
    %c0_i32_1 = arith.constant 0 : i32
    return %c0_i32, %c0_i32_0 : i32, i32
  }
  func.func @transform_5(%arg0: i32, %arg1: memref<64xi32, #tpu.memory_space<smem>>) -> (i32, i32) {
    %c0_i32 = arith.constant 0 : i32
    %c0_i32_0 = arith.constant 0 : i32
    %c0_i32_1 = arith.constant 0 : i32
    return %c0_i32, %c0_i32_0 : i32, i32
  }
  func.func @transform_6(%arg0: i32, %arg1: memref<64xi32, #tpu.memory_space<smem>>) -> (i32, i32) {
    %c0_i32 = arith.constant 0 : i32
    %c0_i32_0 = arith.constant 0 : i32
    %c0_i32_1 = arith.constant 0 : i32
    return %c0_i32, %c0_i32_0 : i32, i32
  }
  func.func @transform_7(%arg0: i32, %arg1: memref<64xi32, #tpu.memory_space<smem>>) -> (i32, i32) {
    %c0_i32 = arith.constant 0 : i32
    %c0_i32_0 = arith.constant 0 : i32
    %c0_i32_1 = arith.constant 0 : i32
    return %c0_i32, %c0_i32_0 : i32, i32
  }
  func.func @transform_9(%arg0: i32, %arg1: memref<64xi32, #tpu.memory_space<smem>>) -> (i32, i32) {
    %c0_i32 = arith.constant 0 : i32
    %c0_i32_0 = arith.constant 0 : i32
    return %arg0, %c0_i32 : i32, i32
  }
  func.func @transform_10(%arg0: i32, %arg1: memref<64xi32, #tpu.memory_space<smem>>) -> (i32, i32) {
    %c0_i32 = arith.constant 0 : i32
    %c0_i32_0 = arith.constant 0 : i32
    return %arg0, %c0_i32 : i32, i32
  }
}

</mosaic_0001>

<llo_original>
// kernel: tpu_custom_call.1
$region0: #{tpu_custom_call.1}
  #allocation0 [shape = 'u32[]', space=smem, size = 0x4, offset = 0x4, fixed_abs, tag = 'smem constant byte address 0x4 - core index']
  #allocation1 [shape = 'u32[72,128]{1,0:T(1,128)}', space=vmem, size = 0x9000, scoped, tag = 'internal scratch']
  #allocation2 [shape = 's32[64,128]{1,0:T(8,128)}', space=vmem, size = 0x8000, scoped, tag = 'scratch operand']
  #allocation3 [shape = 's32[1]{0}', space=sflag, size = 0x4, scoped, tag = 'scratch operand']
  #allocation4 [shape = 's32[1]{0}', space=sflag, size = 0x4, scoped, tag = 'scoped memory for tpu_custom_call.1']
  #allocation5 [shape = 'u8[512]{0}', space=smem, size = 0x200, scoped, tag = 'prefetched SMEM operand 0']
  #allocation17 [shape = 's32[]', space=sflag, size = 0x4, offset = 0, fixed_abs, tag = 'sflag constant byte address 0x0 - dummy sync flag']
  #allocation18 [shape = 's32[]', space=sflag, size = 0x4, offset = 0, fixed_abs, tag = 'sflag constant byte address 0x0 - dummy sync flag']
  #allocation19 [shape = 'u32[]', space=smem, size = 0x4, offset = 0x44, fixed_abs, tag = 'smem constant byte address 0x44 - assertion arg 0']
  #allocation20 [shape = 'u32[]', space=smem, size = 0x4, offset = 0x48, fixed_abs, tag = 'smem constant byte address 0x48 - assertion arg 1']
  %s0 = inlined_call_operand.vmem [shape: s32[64], index: 0, kind: input, shape index: {}]
  %s1 = inlined_call_operand.vmem [shape: s32[8,1], index: 1, kind: input, shape index: {}]
  %s2 = inlined_call_operand.vmem [shape: f32[8,1,128], index: 2, kind: input, shape index: {}]
  %s3 = inlined_call_operand.hbm [shape: f32[8,1,128], index: 3, kind: input, shape index: {}]
  %s4 = inlined_call_operand.hbm [shape: f32[128,128], index: 4, kind: input, shape index: {}]
  %s5 = inlined_call_operand.hbm [shape: f32[128,128], index: 5, kind: input, shape index: {}]
  %s6 = inlined_call_operand.vmem [shape: f32[1,128], index: 6, kind: input, shape index: {}]
  %s7 = inlined_call_operand.hbm [shape: f32[128,128], index: 7, kind: input, shape index: {}]
  %s8 = inlined_call_operand.vmem [shape: f32[1,128], index: 8, kind: input, shape index: {}]
  %s9 = inlined_call_operand.hbm [shape: u32[50,128], index: 9, kind: input, shape index: {}]
  %s10 = inlined_call_operand.hbm [shape: f32[8,128], index: 10, kind: output, shape index: {0}]
  %s11 = inlined_call_operand.hbm [shape: f32[8,128], index: 11, kind: output, shape index: {1}]
  %12 = xla_tuple %s10, %s11
  %s13 = sld [smem:[#allocation0]]
  $region84: #{tpu_custom_call.1} parent=0
    _
  %s15 = ssub.s32 1, %s13
  %s16 = scalar_select 0, %s15, %s13
  %s18 = sshll.u32 %s0, 4
  %s19 = int_to_ptr.vmem [resolvable:$true] %s18
  %21 = dma.vmem_to_smem %s19, 16, [#allocation5], [#allocation4]
  %23 = dma.done [#allocation4], 16
  %24 = sfence
  $region1: #{tpu_custom_call.1} parent=0
    #allocation6 [shape = 'u8[4096]{0}', space=vmem, size = 0x1000, scoped, tag = 'input window, operand 3, single buffered']
    #allocation7 [shape = 's32[1]{0}', space=sflag, size = 0x4, scoped, tag = 'scoped memory for tpu_custom_call.1']
    #allocation8 [shape = 's32[1]{0}', space=sflag, size = 0x4, scoped, tag = 'scoped memory for tpu_custom_call.1']
    #allocation9 [shape = 'u8[65536]{0}', space=vmem, size = 0x10000, scoped, tag = 'input window, operand 4, single buffered']
    #allocation10 [shape = 's32[1]{0}', space=sflag, size = 0x4, scoped, tag = 'scoped memory for tpu_custom_call.1']
    #allocation11 [shape = 'u8[65536]{0}', space=vmem, size = 0x10000, scoped, tag = 'input window, operand 5, single buffered']
    #allocation12 [shape = 'u8[65536]{0}', space=vmem, size = 0x10000, scoped, tag = 'input window, operand 7, single buffered']
    #allocation13 [shape = 's32[1]{0}', space=sflag, size = 0x4, scoped, tag = 'scoped memory for tpu_custom_call.1']
    #allocation14 [shape = 'u8[4096]{0}', space=vmem, size = 0x1000, scoped, tag = 'output window, operand 0, single buffered']
    #allocation15 [shape = 'u8[4096]{0}', space=vmem, size = 0x1000, scoped, tag = 'output window, operand 1, single buffered']
    #allocation16 [shape = 's32[1]{0}', space=sflag, size = 0x4, scoped, tag = 'scoped memory for tpu_custom_call.1']
    %25 = vsyncpa [#allocation7], 0
    %26 = vsyncpa [#allocation10], 0
    %27 = vsyncpa [#allocation13], 0
    %28 = vsyncpa [#allocation8], 0
    %29 = vsyncpa [#allocation16], 0
    // Predicated region
    $region2: #{tpu_custom_call.1} parent=1 // pred_check
      _
    $region3: #{tpu_custom_call.1} parent=1 // pred_check_branch
      %31 = sbr.rel (0) target = $region5
    $region4: #{tpu_custom_call.1} parent=1 // pred_region
      _
    $region5: #{tpu_custom_call.1} parent=1 // pred_fallthru
      _
    // Predicated region
    $region6: #{tpu_custom_call.1} parent=1 // pred_check
      _
    $region7: #{tpu_custom_call.1} parent=1 // pred_check_branch
      %33 = sbr.rel (0) target = $region9
    $region8: #{tpu_custom_call.1} parent=1 // pred_region
      _
    $region9: #{tpu_custom_call.1} parent=1 // pred_fallthru
      _
    // Predicated region
    $region10: #{tpu_custom_call.1} parent=1 // pred_check
      _
    $region11: #{tpu_custom_call.1} parent=1 // pred_check_branch
      %35 = sbr.rel (0) target = $region13
    $region12: #{tpu_custom_call.1} parent=1 // pred_region
      %37 = vsyncadd [#allocation7], 0
      %s38 = sshll.u32 %s3, 4
      %s39 = int_to_ptr.hbm [resolvable:$true] %s38
      %s40 = sshll.u32 [#allocation6], 4
      %s41 = int_to_ptr.vmem [resolvable:$true] %s40
      %46 = dma.hbm_to_vmem [thread:$0]  %s39, 128, %s41, [#allocation7], 16, 16, 1
    $region13: #{tpu_custom_call.1} parent=1 // pred_fallthru
      _
    // Predicated region
    $region14: #{tpu_custom_call.1} parent=1 // pred_check
      _
    $region15: #{tpu_custom_call.1} parent=1 // pred_check_branch
      %48 = sbr.rel (0) target = $region17
    $region16: #{tpu_custom_call.1} parent=1 // pred_region
      %50 = vsyncadd [#allocation10], 0
      %s51 = sshll.u32 %s4, 4
      %s52 = int_to_ptr.hbm [resolvable:$true] %s51
      %s53 = sshll.u32 [#allocation9], 4
      %s54 = int_to_ptr.vmem [resolvable:$true] %s53
      %59 = dma.hbm_to_vmem [thread:$0]  %s52, 2048, %s54, [#allocation10], 128, 128, 8
    $region17: #{tpu_custom_call.1} parent=1 // pred_fallthru
      _
    // Predicated region
    $region18: #{tpu_custom_call.1} parent=1 // pred_check
      _
    $region19: #{tpu_custom_call.1} parent=1 // pred_check_branch
      %61 = sbr.rel (0) target = $region21
    $region20: #{tpu_custom_call.1} parent=1 // pred_region
      %63 = vsyncadd [#allocation10], 0
      %s64 = sshll.u32 %s5, 4
      %s65 = int_to_ptr.hbm [resolvable:$true] %s64
      %s66 = sshll.u32 [#allocation11], 4
      %s67 = int_to_ptr.vmem [resolvable:$true] %s66
      %72 = dma.hbm_to_vmem [thread:$0]  %s65, 2048, %s67, [#allocation10], 128, 128, 8
    $region21: #{tpu_custom_call.1} parent=1 // pred_fallthru
      _
    // Predicated region
    $region22: #{tpu_custom_call.1} parent=1 // pred_check
      _
    $region23: #{tpu_custom_call.1} parent=1 // pred_check_branch
      %74 = sbr.rel (0) target = $region25
    $region24: #{tpu_custom_call.1} parent=1 // pred_region
      _
    $region25: #{tpu_custom_call.1} parent=1 // pred_fallthru
      _
    // Predicated region
    $region26: #{tpu_custom_call.1} parent=1 // pred_check
      _
    $region27: #{tpu_custom_call.1} parent=1 // pred_check_branch
      %76 = sbr.rel (0) target = $region29
    $region28: #{tpu_custom_call.1} parent=1 // pred_region
      %78 = vsyncadd [#allocation13], 0
      %s79 = sshll.u32 %s7, 4
      %s80 = int_to_ptr.hbm [resolvable:$true] %s79
      %s81 = sshll.u32 [#allocation12], 4
      %s82 = int_to_ptr.vmem [resolvable:$true] %s81
      %87 = dma.hbm_to_vmem [thread:$0]  %s80, 2048, %s82, [#allocation13], 128, 128, 8
    $region29: #{tpu_custom_call.1} parent=1 // pred_fallthru
      _
    // Predicated region
    $region30: #{tpu_custom_call.1} parent=1 // pred_check
      _
    $region31: #{tpu_custom_call.1} parent=1 // pred_check_branch
      %89 = sbr.rel (0) target = $region33
    $region32: #{tpu_custom_call.1} parent=1 // pred_region
      _
    $region33: #{tpu_custom_call.1} parent=1 // pred_fallthru
      _
    // Predicated region
    $region34: #{tpu_custom_call.1} parent=1 // pred_check
      _
    $region35: #{tpu_custom_call.1} parent=1 // pred_check_branch
      %91 = sbr.rel (0) target = $region37
    $region36: #{tpu_custom_call.1} parent=1 // pred_region
      %93 = dma.done [#allocation7], 128
    $region37: #{tpu_custom_call.1} parent=1 // pred_fallthru
      _
    // Predicated region
    $region38: #{tpu_custom_call.1} parent=1 // pred_check
      _
    $region39: #{tpu_custom_call.1} parent=1 // pred_check_branch
      %95 = sbr.rel (0) target = $region41
    $region40: #{tpu_custom_call.1} parent=1 // pred_region
      %97 = dma.done [#allocation10], 2048
    $region41: #{tpu_custom_call.1} parent=1 // pred_fallthru
      _
    // Predicated region
    $region42: #{tpu_custom_call.1} parent=1 // pred_check
      _
    $region43: #{tpu_custom_call.1} parent=1 // pred_check_branch
      %99 = sbr.rel (0) target = $region45
    $region44: #{tpu_custom_call.1} parent=1 // pred_region
      %101 = dma.done [#allocation10], 2048
    $region45: #{tpu_custom_call.1} parent=1 // pred_fallthru
      _
    // Predicated region
    $region46: #{tpu_custom_call.1} parent=1 // pred_check
      _
    $region47: #{tpu_custom_call.1} parent=1 // pred_check_branch
      %103 = sbr.rel (0) target = $region49
    $region48: #{tpu_custom_call.1} parent=1 // pred_region
      %105 = dma.done [#allocation13], 2048
    $region49: #{tpu_custom_call.1} parent=1 // pred_fallthru
      _
    %s106 = smul.u32 0, 64
    loop: start=0, step=1, limit=64
    $region50: #{tpu_custom_call.1} parent=1 // loop_pre_header
      _
    $region51: #{tpu_custom_call.1} parent=1 // loop_header
      %s108 = sphi 0, %s112
      %p109 = scmp.ge.s32.totalorder %s108, 64
    $region52: #{tpu_custom_call.1} parent=1 // loop_header_branch
      %111 = sbr.rel (%p109) target = $region56
    $region53: #{tpu_custom_call.1} parent=1 // loop_body
      %s113 = sadd.s32 %s106, %s108
      %s114 = sld [smem:[#allocation5 + %s113]]
      %s115 = scalar_lea.hbm %s9, %s114
      %s116 = scalar_lea.vmem [#allocation2], %s108
      // Predicated region
      $region57: #{tpu_custom_call.1} parent=53 // pred_check
        _
      $region58: #{tpu_custom_call.1} parent=53 // pred_check_branch
        %118 = sbr.rel target = $region60
      $region59: #{tpu_custom_call.1} parent=53 // pred_region
        %119 = sst [smem:[#allocation19]] [#allocation18]
        %120 = sst [smem:[#allocation20]] [#allocation17]
      $region60: #{tpu_custom_call.1} parent=53 // pred_fallthru
        _
      %122 = shalt.err (0)
      %s124 = sshll.u32 %s115, 4
      %s125 = int_to_ptr.hbm [resolvable:$true] %s124
      %s126 = sshll.u32 %s116, 4
      %s127 = int_to_ptr.vmem [resolvable:$true] %s126
      %129 = dma.hbm_to_vmem [thread:$0]  %s125, 16, %s127, [#allocation3]
    $region54: #{tpu_custom_call.1} parent=1 // loop_footer
      %s112 = sadd.s32 1, %s108
    $region55: #{tpu_custom_call.1} parent=1 // loop_footer_branch
      %107 = sbr.rel target = $region51
    $region56: #{tpu_custom_call.1} parent=1 // loop_exit
      _
    loop: start=0, step=1, limit=64
    $region61: #{tpu_custom_call.1} parent=1 // loop_pre_header
      _
    $region62: #{tpu_custom_call.1} parent=1 // loop_header
      %s131 = sphi 0, %s135
      %p132 = scmp.ge.s32.totalorder %s131, 64
    $region63: #{tpu_custom_call.1} parent=1 // loop_header_branch
      %134 = sbr.rel (%p132) target = $region67
    $region64: #{tpu_custom_call.1} parent=1 // loop_body
      %137 = dma.done [#allocation3], 16
    $region65: #{tpu_custom_call.1} parent=1 // loop_footer
      %s135 = sadd.s32 1, %s131
    $region66: #{tpu_custom_call.1} parent=1 // loop_footer_branch
      %130 = sbr.rel target = $region62
    $region67: #{tpu_custom_call.1} parent=1 // loop_exit
      _
    %v138 = vld [vmem:[#allocation2] sm:$0xff]
    %v139 = vld [vmem:[#allocation2 + $0x8] sm:$0xff]
    %v140 = vld [vmem:[#allocation2 + $0x10] sm:$0xff]
    %v141 = vld [vmem:[#allocation2 + $0x18] sm:$0xff]
    %v142 = vld [vmem:[#allocation2 + $0x20] sm:$0xff]
    %v143 = vld [vmem:[#allocation2 + $0x28] sm:$0xff]
    %v144 = vld [vmem:[#allocation2 + $0x30] sm:$0xff]
    %v145 = vld [vmem:[#allocation2 + $0x38] sm:$0xff]
    %v146 = vshll.u32 %v138, 16
    %v147 = vshll.u32 %v139, 16
    %v148 = vshll.u32 %v140, 16
    %v149 = vshll.u32 %v141, 16
    %v150 = vshll.u32 %v142, 16
    %v151 = vshll.u32 %v143, 16
    %v152 = vshll.u32 %v144, 16
    %v153 = vshll.u32 %v145, 16
    %v162 = vand.u32 %v138, 4294901760
    %v163 = vand.u32 %v139, 4294901760
    %v164 = vand.u32 %v140, 4294901760
    %v165 = vand.u32 %v141, 4294901760
    %v166 = vand.u32 %v142, 4294901760
    %v167 = vand.u32 %v143, 4294901760
    %v168 = vand.u32 %v144, 4294901760
    %v169 = vand.u32 %v145, 4294901760
    %v178 = vld [vmem:[%s2] sm:$0x1]
    %v179 = vld [vmem:[%s2 + $0x1] sm:$0x1]
    %v180 = vld [vmem:[%s2 + $0x2] sm:$0x1]
    %v181 = vld [vmem:[%s2 + $0x3] sm:$0x1]
    %v182 = vld [vmem:[%s2 + $0x4] sm:$0x1]
    %v183 = vld [vmem:[%s2 + $0x5] sm:$0x1]
    %v184 = vld [vmem:[%s2 + $0x6] sm:$0x1]
    %v185 = vld [vmem:[%s2 + $0x7] sm:$0x1]
    %v186 = vld [vmem:[#allocation6] sm:$0x1]
    %v187 = vld [vmem:[#allocation6 + $0x1] sm:$0x1]
    %v188 = vld [vmem:[#allocation6 + $0x2] sm:$0x1]
    %v189 = vld [vmem:[#allocation6 + $0x3] sm:$0x1]
    %v190 = vld [vmem:[#allocation6 + $0x4] sm:$0x1]
    %v191 = vld [vmem:[#allocation6 + $0x5] sm:$0x1]
    %v192 = vld [vmem:[#allocation6 + $0x6] sm:$0x1]
    %v193 = vld [vmem:[#allocation6 + $0x7] sm:$0x1]
    %194 = vmatpush.xpose.msra.mxu0 0.0
    %195 = vmatpush.xpose.msra.mxu0 0.0
    %196 = vmatpush.xpose.msra.mxu0 0.0
    %197 = vmatpush.xpose.msra.mxu0 0.0
    %198 = vmatpush.xpose.msra.mxu0 0.0
    %199 = vmatpush.xpose.msra.mxu0 0.0
    %200 = vmatpush.xpose.msra.mxu0 0.0
    %201 = vmatpush.xpose.msra.mxu0 0.0
    %202 = vmatpush.xpose.msra.mxu0 0.0
    %203 = vmatpush.xpose.msra.mxu0 0.0
    %204 = vmatpush.xpose.msra.mxu0 0.0
    %205 = vmatpush.xpose.msra.mxu0 0.0
    %206 = vmatpush.xpose.msra.mxu0 0.0
    %207 = vmatpush.xpose.msra.mxu0 0.0
    %208 = vmatpush.xpose.msra.mxu0 0.0
    %209 = vmatpush.xpose.msra.mxu0 %v162
    %210 = vmatmul.f32.gmra.mxu0 %v186
    %v211 = vpop.f32.mrf.mxu0
    %v212 = vadd.f32 0.0, %v211
    %213 = vdwg.mxu0
    %214 = vmatpush.xpose.msra.mxu0 0.0
    %215 = vmatpush.xpose.msra.mxu0 0.0
    %216 = vmatpush.xpose.msra.mxu0 0.0
    %217 = vmatpush.xpose.msra.mxu0 0.0
    %218 = vmatpush.xpose.msra.mxu0 0.0
    %219 = vmatpush.xpose.msra.mxu0 0.0
    %220 = vmatpush.xpose.msra.mxu0 0.0
    %221 = vmatpush.xpose.msra.mxu0 0.0
    %222 = vmatpush.xpose.msra.mxu0 0.0
    %223 = vmatpush.xpose.msra.mxu0 0.0
    %224 = vmatpush.xpose.msra.mxu0 0.0
    %225 = vmatpush.xpose.msra.mxu0 0.0
    %226 = vmatpush.xpose.msra.mxu0 0.0
    %227 = vmatpush.xpose.msra.mxu0 0.0
    %228 = vmatpush.xpose.msra.mxu0 0.0
    %229 = vmatpush.xpose.msra.mxu0 %v163
    %230 = vmatmul.f32.gmra.mxu0 %v187
    %v231 = vpop.f32.mrf.mxu0
    %v232 = vadd.f32 0.0, %v231
    %233 = vdwg.mxu0
    %234 = vmatpush.xpose.msra.mxu0 0.0
    %235 = vmatpush.xpose.msra.mxu0 0.0
    %236 = vmatpush.xpose.msra.mxu0 0.0
    %237 = vmatpush.xpose.msra.mxu0 0.0
    %238 = vmatpush.xpose.msra.mxu0 0.0
    %239 = vmatpush.xpose.msra.mxu0 0.0
    %240 = vmatpush.xpose.msra.mxu0 0.0
    %241 = vmatpush.xpose.msra.mxu0 0.0
    %242 = vmatpush.xpose.msra.mxu0 0.0
    %243 = vmatpush.xpose.msra.mxu0 0.0
    %244 = vmatpush.xpose.msra.mxu0 0.0
    %245 = vmatpush.xpose.msra.mxu0 0.0
    %246 = vmatpush.xpose.msra.mxu0 0.0
    %247 = vmatpush.xpose.msra.mxu0 0.0
    %248 = vmatpush.xpose.msra.mxu0 0.0
    %249 = vmatpush.xpose.msra.mxu0 %v164
    %250 = vmatmul.f32.gmra.mxu0 %v188
    %v251 = vpop.f32.mrf.mxu0
    %v252 = vadd.f32 0.0, %v251
    %253 = vdwg.mxu0
    %254 = vmatpush.xpose.msra.mxu0 0.0
    %255 = vmatpush.xpose.msra.mxu0 0.0
    %256 = vmatpush.xpose.msra.mxu0 0.0
    %257 = vmatpush.xpose.msra.mxu0 0.0
    %258 = vmatpush.xpose.msra.mxu0 0.0
    %259 = vmatpush.xpose.msra.mxu0 0.0
    %260 = vmatpush.xpose.msra.mxu0 0.0
    %261 = vmatpush.xpose.msra.mxu0 0.0
    %262 = vmatpush.xpose.msra.mxu0 0.0
    %263 = vmatpush.xpose.msra.mxu0 0.0
    %264 = vmatpush.xpose.msra.mxu0 0.0
    %265 = vmatpush.xpose.msra.mxu0 0.0
    %266 = vmatpush.xpose.msra.mxu0 0.0
    %267 = vmatpush.xpose.msra.mxu0 0.0
    %268 = vmatpush.xpose.msra.mxu0 0.0
    %269 = vmatpush.xpose.msra.mxu0 %v165
    %270 = vmatmul.f32.gmra.mxu0 %v189
    %v271 = vpop.f32.mrf.mxu0
    %v272 = vadd.f32 0.0, %v271
    %273 = vdwg.mxu0
    %274 = vmatpush.xpose.msra.mxu0 0.0
    %275 = vmatpush.xpose.msra.mxu0 0.0
    %276 = vmatpush.xpose.msra.mxu0 0.0
    %277 = vmatpush.xpose.msra.mxu0 0.0
    %278 = vmatpush.xpose.msra.mxu0 0.0
    %279 = vmatpush.xpose.msra.mxu0 0.0
    %280 = vmatpush.xpose.msra.mxu0 0.0
    %281 = vmatpush.xpose.msra.mxu0 0.0
    %282 = vmatpush.xpose.msra.mxu0 0.0
    %283 = vmatpush.xpose.msra.mxu0 0.0
    %284 = vmatpush.xpose.msra.mxu0 0.0
    %285 = vmatpush.xpose.msra.mxu0 0.0
    %286 = vmatpush.xpose.msra.mxu0 0.0
    %287 = vmatpush.xpose.msra.mxu0 0.0
    %288 = vmatpush.xpose.msra.mxu0 0.0
    %289 = vmatpush.xpose.msra.mxu0 %v166
    %290 = vmatmul.f32.gmra.mxu0 %v190
    %v291 = vpop.f32.mrf.mxu0
    %v292 = vadd.f32 0.0, %v291
    %293 = vdwg.mxu0
    %294 = vmatpush.xpose.msra.mxu0 0.0
    %295 = vmatpush.xpose.msra.mxu0 0.0
    %296 = vmatpush.xpose.msra.mxu0 0.0
    %297 = vmatpush.xpose.msra.mxu0 0.0
    %298 = vmatpush.xpose.msra.mxu0 0.0
    %299 = vmatpush.xpose.msra.mxu0 0.0
    %300 = vmatpush.xpose.msra.mxu0 0.0
    %301 = vmatpush.xpose.msra.mxu0 0.0
    %302 = vmatpush.xpose.msra.mxu0 0.0
    %303 = vmatpush.xpose.msra.mxu0 0.0
    %304 = vmatpush.xpose.msra.mxu0 0.0
    %305 = vmatpush.xpose.msra.mxu0 0.0
    %306 = vmatpush.xpose.msra.mxu0 0.0
    %307 = vmatpush.xpose.msra.mxu0 0.0
    %308 = vmatpush.xpose.msra.mxu0 0.0
    %309 = vmatpush.xpose.msra.mxu0 %v167
    %310 = vmatmul.f32.gmra.mxu0 %v191
    %v311 = vpop.f32.mrf.mxu0
    %v312 = vadd.f32 0.0, %v311
    %313 = vdwg.mxu0
    %314 = vmatpush.xpose.msra.mxu0 0.0
    %315 = vmatpush.xpose.msra.mxu0 0.0
    %316 = vmatpush.xpose.msra.mxu0 0.0
    %317 = vmatpush.xpose.msra.mxu0 0.0
    %318 = vmatpush.xpose.msra.mxu0 0.0
    %319 = vmatpush.xpose.msra.mxu0 0.0
    %320 = vmatpush.xpose.msra.mxu0 0.0
    %321 = vmatpush.xpose.msra.mxu0 0.0
    %322 = vmatpush.xpose.msra.mxu0 0.0
    %323 = vmatpush.xpose.msra.mxu0 0.0
    %324 = vmatpush.xpose.msra.mxu0 0.0
    %325 = vmatpush.xpose.msra.mxu0 0.0
    %326 = vmatpush.xpose.msra.mxu0 0.0
    %327 = vmatpush.xpose.msra.mxu0 0.0
    %328 = vmatpush.xpose.msra.mxu0 0.0
    %329 = vmatpush.xpose.msra.mxu0 %v168
    %330 = vmatmul.f32.gmra.mxu0 %v192
    %v331 = vpop.f32.mrf.mxu0
    %v332 = vadd.f32 0.0, %v331
    %333 = vdwg.mxu0
    %334 = vmatpush.xpose.msra.mxu0 0.0
    %335 = vmatpush.xpose.msra.mxu0 0.0
    %336 = vmatpush.xpose.msra.mxu0 0.0
    %337 = vmatpush.xpose.msra.mxu0 0.0
    %338 = vmatpush.xpose.msra.mxu0 0.0
    %339 = vmatpush.xpose.msra.mxu0 0.0
    %340 = vmatpush.xpose.msra.mxu0 0.0
    %341 = vmatpush.xpose.msra.mxu0 0.0
    %342 = vmatpush.xpose.msra.mxu0 0.0
    %343 = vmatpush.xpose.msra.mxu0 0.0
    %344 = vmatpush.xpose.msra.mxu0 0.0
    %345 = vmatpush.xpose.msra.mxu0 0.0
    %346 = vmatpush.xpose.msra.mxu0 0.0
    %347 = vmatpush.xpose.msra.mxu0 0.0
    %348 = vmatpush.xpose.msra.mxu0 0.0
    %349 = vmatpush.xpose.msra.mxu0 %v169
    %350 = vmatmul.f32.gmra.mxu0 %v193
    %v351 = vpop.f32.mrf.mxu0
    %v352 = vadd.f32 0.0, %v351
    %353 = vdwg.mxu0
    %354 = vmatpush.xpose.msra.mxu0 0.0
    %355 = vmatpush.xpose.msra.mxu0 0.0
    %356 = vmatpush.xpose.msra.mxu0 0.0
    %357 = vmatpush.xpose.msra.mxu0 0.0
    %358 = vmatpush.xpose.msra.mxu0 0.0
    %359 = vmatpush.xpose.msra.mxu0 0.0
    %360 = vmatpush.xpose.msra.mxu0 0.0
    %361 = vmatpush.xpose.msra.mxu0 0.0
    %362 = vmatpush.xpose.msra.mxu0 0.0
    %363 = vmatpush.xpose.msra.mxu0 0.0
    %364 = vmatpush.xpose.msra.mxu0 0.0
    %365 = vmatpush.xpose.msra.mxu0 0.0
    %366 = vmatpush.xpose.msra.mxu0 0.0
    %367 = vmatpush.xpose.msra.mxu0 0.0
    %368 = vmatpush.xpose.msra.mxu0 0.0
    %369 = vmatpush.xpose.msra.mxu0 %v146
    %370 = vmatmul.f32.gmra.mxu0 %v178
    %v371 = vpop.f32.mrf.mxu0
    %v372 = vadd.f32 %v212, %v371
    %373 = vdwg.mxu0
    %374 = vmatpush.xpose.msra.mxu0 0.0
    %375 = vmatpush.xpose.msra.mxu0 0.0
    %376 = vmatpush.xpose.msra.mxu0 0.0
    %377 = vmatpush.xpose.msra.mxu0 0.0
    %378 = vmatpush.xpose.msra.mxu0 0.0
    %379 = vmatpush.xpose.msra.mxu0 0.0
    %380 = vmatpush.xpose.msra.mxu0 0.0
    %381 = vmatpush.xpose.msra.mxu0 0.0
    %382 = vmatpush.xpose.msra.mxu0 0.0
    %383 = vmatpush.xpose.msra.mxu0 0.0
    %384 = vmatpush.xpose.msra.mxu0 0.0
    %385 = vmatpush.xpose.msra.mxu0 0.0
    %386 = vmatpush.xpose.msra.mxu0 0.0
    %387 = vmatpush.xpose.msra.mxu0 0.0
    %388 = vmatpush.xpose.msra.mxu0 0.0
    %389 = vmatpush.xpose.msra.mxu0 %v147
    %390 = vmatmul.f32.gmra.mxu0 %v179
    %v391 = vpop.f32.mrf.mxu0
    %v392 = vadd.f32 %v232, %v391
    %393 = vdwg.mxu0
    %394 = vmatpush.xpose.msra.mxu0 0.0
    %395 = vmatpush.xpose.msra.mxu0 0.0
    %396 = vmatpush.xpose.msra.mxu0 0.0
    %397 = vmatpush.xpose.msra.mxu0 0.0
    %398 = vmatpush.xpose.msra.mxu0 0.0
    %399 = vmatpush.xpose.msra.mxu0 0.0
    %400 = vmatpush.xpose.msra.mxu0 0.0
    %401 = vmatpush.xpose.msra.mxu0 0.0
    %402 = vmatpush.xpose.msra.mxu0 0.0
    %403 = vmatpush.xpose.msra.mxu0 0.0
    %404 = vmatpush.xpose.msra.mxu0 0.0
    %405 = vmatpush.xpose.msra.mxu0 0.0
    %406 = vmatpush.xpose.msra.mxu0 0.0
    %407 = vmatpush.xpose.msra.mxu0 0.0
    %408 = vmatpush.xpose.msra.mxu0 0.0
    %409 = vmatpush.xpose.msra.mxu0 %v148
    %410 = vmatmul.f32.gmra.mxu0 %v180
    %v411 = vpop.f32.mrf.mxu0
    %v412 = vadd.f32 %v252, %v411
    %413 = vdwg.mxu0
    %414 = vmatpush.xpose.msra.mxu0 0.0
    %415 = vmatpush.xpose.msra.mxu0 0.0
    %416 = vmatpush.xpose.msra.mxu0 0.0
    %417 = vmatpush.xpose.msra.mxu0 0.0
    %418 = vmatpush.xpose.msra.mxu0 0.0
    %419 = vmatpush.xpose.msra.mxu0 0.0
    %420 = vmatpush.xpose.msra.mxu0 0.0
    %421 = vmatpush.xpose.msra.mxu0 0.0
    %422 = vmatpush.xpose.msra.mxu0 0.0
    %423 = vmatpush.xpose.msra.mxu0 0.0
    %424 = vmatpush.xpose.msra.mxu0 0.0
    %425 = vmatpush.xpose.msra.mxu0 0.0
    %426 = vmatpush.xpose.msra.mxu0 0.0
    %427 = vmatpush.xpose.msra.mxu0 0.0
    %428 = vmatpush.xpose.msra.mxu0 0.0
    %429 = vmatpush.xpose.msra.mxu0 %v149
    %430 = vmatmul.f32.gmra.mxu0 %v181
    %v431 = vpop.f32.mrf.mxu0
    %v432 = vadd.f32 %v272, %v431
    %433 = vdwg.mxu0
    %434 = vmatpush.xpose.msra.mxu0 0.0
    %435 = vmatpush.xpose.msra.mxu0 0.0
    %436 = vmatpush.xpose.msra.mxu0 0.0
    %437 = vmatpush.xpose.msra.mxu0 0.0
    %438 = vmatpush.xpose.msra.mxu0 0.0
    %439 = vmatpush.xpose.msra.mxu0 0.0
    %440 = vmatpush.xpose.msra.mxu0 0.0
    %441 = vmatpush.xpose.msra.mxu0 0.0
    %442 = vmatpush.xpose.msra.mxu0 0.0
    %443 = vmatpush.xpose.msra.mxu0 0.0
    %444 = vmatpush.xpose.msra.mxu0 0.0
    %445 = vmatpush.xpose.msra.mxu0 0.0
    %446 = vmatpush.xpose.msra.mxu0 0.0
    %447 = vmatpush.xpose.msra.mxu0 0.0
    %448 = vmatpush.xpose.msra.mxu0 0.0
    %449 = vmatpush.xpose.msra.mxu0 %v150
    %450 = vmatmul.f32.gmra.mxu0 %v182
    %v451 = vpop.f32.mrf.mxu0
    %v452 = vadd.f32 %v292, %v451
    %453 = vdwg.mxu0
    %454 = vmatpush.xpose.msra.mxu0 0.0
    %455 = vmatpush.xpose.msra.mxu0 0.0
    %456 = vmatpush.xpose.msra.mxu0 0.0
    %457 = vmatpush.xpose.msra.mxu0 0.0
    %458 = vmatpush.xpose.msra.mxu0 0.0
    %459 = vmatpush.xpose.msra.mxu0 0.0
    %460 = vmatpush.xpose.msra.mxu0 0.0
    %461 = vmatpush.xpose.msra.mxu0 0.0
    %462 = vmatpush.xpose.msra.mxu0 0.0
    %463 = vmatpush.xpose.msra.mxu0 0.0
    %464 = vmatpush.xpose.msra.mxu0 0.0
    %465 = vmatpush.xpose.msra.mxu0 0.0
    %466 = vmatpush.xpose.msra.mxu0 0.0
    %467 = vmatpush.xpose.msra.mxu0 0.0
    %468 = vmatpush.xpose.msra.mxu0 0.0
    %469 = vmatpush.xpose.msra.mxu0 %v151
    %470 = vmatmul.f32.gmra.mxu0 %v183
    %v471 = vpop.f32.mrf.mxu0
    %v472 = vadd.f32 %v312, %v471
    %473 = vdwg.mxu0
    %474 = vmatpush.xpose.msra.mxu0 0.0
    %475 = vmatpush.xpose.msra.mxu0 0.0
    %476 = vmatpush.xpose.msra.mxu0 0.0
    %477 = vmatpush.xpose.msra.mxu0 0.0
    %478 = vmatpush.xpose.msra.mxu0 0.0
    %479 = vmatpush.xpose.msra.mxu0 0.0
    %480 = vmatpush.xpose.msra.mxu0 0.0
    %481 = vmatpush.xpose.msra.mxu0 0.0
    %482 = vmatpush.xpose.msra.mxu0 0.0
    %483 = vmatpush.xpose.msra.mxu0 0.0
    %484 = vmatpush.xpose.msra.mxu0 0.0
    %485 = vmatpush.xpose.msra.mxu0 0.0
    %486 = vmatpush.xpose.msra.mxu0 0.0
    %487 = vmatpush.xpose.msra.mxu0 0.0
    %488 = vmatpush.xpose.msra.mxu0 0.0
    %489 = vmatpush.xpose.msra.mxu0 %v152
    %490 = vmatmul.f32.gmra.mxu0 %v184
    %v491 = vpop.f32.mrf.mxu0
    %v492 = vadd.f32 %v332, %v491
    %493 = vdwg.mxu0
    %494 = vmatpush.xpose.msra.mxu0 0.0
    %495 = vmatpush.xpose.msra.mxu0 0.0
    %496 = vmatpush.xpose.msra.mxu0 0.0
    %497 = vmatpush.xpose.msra.mxu0 0.0
    %498 = vmatpush.xpose.msra.mxu0 0.0
    %499 = vmatpush.xpose.msra.mxu0 0.0
    %500 = vmatpush.xpose.msra.mxu0 0.0
    %501 = vmatpush.xpose.msra.mxu0 0.0
    %502 = vmatpush.xpose.msra.mxu0 0.0
    %503 = vmatpush.xpose.msra.mxu0 0.0
    %504 = vmatpush.xpose.msra.mxu0 0.0
    %505 = vmatpush.xpose.msra.mxu0 0.0
    %506 = vmatpush.xpose.msra.mxu0 0.0
    %507 = vmatpush.xpose.msra.mxu0 0.0
    %508 = vmatpush.xpose.msra.mxu0 0.0
    %509 = vmatpush.xpose.msra.mxu0 %v153
    %510 = vmatmul.f32.gmra.mxu0 %v185
    %v511 = vpop.f32.mrf.mxu0
    %v512 = vadd.f32 %v352, %v511
    %513 = vdwg.mxu0
    %v514 = vlaneseq
    %v515 = vand.u32 %v514, 127
    %v516 = vld [vmem:[%s1] sm:$0xff]
    %517 = vset.pattern.permute.xlu0 0
    %518 = vperm.xlu0 %517, %v516
    %v519 = vpop.permute.xlu0 %518
    %vm520 = vcmp.lt.s32.totalorder %v515, %v519
    %v529 = vrot.slane %v392, 7
    %vm530 = vcmask 1041409
    %v531 = vsel %vm530, %v529, %v372
    %v532 = vrot.slane %v412, 6
    %vm533 = vcmask 1042434
    %v534 = vsel %vm533, %v532, %v531
    %v535 = vrot.slane %v432, 5
    %vm536 = vcmask 1043459
    %v537 = vsel %vm536, %v535, %v534
    %v538 = vrot.slane %v452, 4
    %vm539 = vcmask 1044484
    %v540 = vsel %vm539, %v538, %v537
    %v541 = vrot.slane %v472, 3
    %vm542 = vcmask 1045509
    %v543 = vsel %vm542, %v541, %v540
    %v544 = vrot.slane %v492, 2
    %vm545 = vcmask 1046534
    %v546 = vsel %vm545, %v544, %v543
    %v547 = vrot.slane %v512, 1
    %vm548 = vcmask 1047559
    %v549 = vsel %vm548, %v547, %v546
    %v551 = vsel %vm520, %v549, -inf
    %vm552 = vcmask 64512
    %v553 = vsel %vm552, %v551, -inf
    %554 = vmax.xlane.f32.xlu0 %v553
    %v555 = vpop.xlane.xlu0 %554
    %v556 = vsub.f32 %v551, %v555
    %v557 = vmul.f32 %v556, 1.442695
    %v558 = vpow.pop %v557
    %v559 = vsel %vm552, %v558, 0.0
    %560 = vadd.xlane.f32.xlu0 %v559
    %v561 = vpop.xlane.xlu0 %560
    %v562 = vrcp.pop %v561
    %v563 = vmul.f32 %v561, %v562
    %v564 = vsub.f32 1.0, %v563
    %v565 = vmul.f32 %v562, %v564
    %v566 = vadd.f32 %v562, %v565
    %vm567 = vweird.f32 %v561
    %vm568 = vweird.f32 %v562
    %vm569 = vmor %vm567, %vm568
    %v570 = vsel %vm569, %v562, %v566
    %v571 = vand.u32 2147483647, %v561
    %vm572 = vcmp.eq.f32.partialorder %v571, 8.507059e+37
    %v573 = vand.u32 %v561, 2147483648
    %v574 = vor.u32 1.1754944e-38, %v573
    %v575 = vsel %vm572, %v574, %v570
    %v576 = vmul.f32 %v558, %v575
    %v577 = vsel %vm552, %v576, 0.0
    %578 = vst [vmem:[#allocation15] sm:$0xff] %v577
    %v580 = vrot.slane %v576, 1
    %v581 = vrot.slane %v576, 2
    %v582 = vrot.slane %v576, 3
    %v583 = vrot.slane %v576, 4
    %v584 = vrot.slane %v576, 5
    %v585 = vrot.slane %v576, 6
    %v586 = vrot.slane %v576, 7
    %v587 = vsel %vm552, %v576, 0
    %589 = vmatpush.msra.mxu0 0.0
    %590 = vmatpush.msra.mxu0 0.0
    %591 = vmatpush.msra.mxu0 0.0
    %592 = vmatpush.msra.mxu0 0.0
    %593 = vmatpush.msra.mxu0 0.0
    %594 = vmatpush.msra.mxu0 0.0
    %595 = vmatpush.msra.mxu0 0.0
    %596 = vmatpush.msra.mxu0 0.0
    %597 = vmatpush.msra.mxu0 0.0
    %598 = vmatpush.msra.mxu0 0.0
    %599 = vmatpush.msra.mxu0 0.0
    %600 = vmatpush.msra.mxu0 0.0
    %601 = vmatpush.msra.mxu0 0.0
    %602 = vmatpush.msra.mxu0 0.0
    %603 = vmatpush.msra.mxu0 0.0
    %604 = vmatpush.msra.mxu0 %v146
    %605 = vmatmul.f32.gmra.mxu0 %v587
    %v606 = vpop.f32.mrf.mxu0
    %v607 = vadd.f32 0.0, %v606
    %608 = vdwg.mxu0
    %v609 = vsel %vm552, %v580, 0
    %611 = vmatpush.msra.mxu0 0.0
    %612 = vmatpush.msra.mxu0 0.0
    %613 = vmatpush.msra.mxu0 0.0
    %614 = vmatpush.msra.mxu0 0.0
    %615 = vmatpush.msra.mxu0 0.0
    %616 = vmatpush.msra.mxu0 0.0
    %617 = vmatpush.msra.mxu0 0.0
    %618 = vmatpush.msra.mxu0 0.0
    %619 = vmatpush.msra.mxu0 0.0
    %620 = vmatpush.msra.mxu0 0.0
    %621 = vmatpush.msra.mxu0 0.0
    %622 = vmatpush.msra.mxu0 0.0
    %623 = vmatpush.msra.mxu0 0.0
    %624 = vmatpush.msra.mxu0 0.0
    %625 = vmatpush.msra.mxu0 0.0
    %626 = vmatpush.msra.mxu0 %v147
    %627 = vmatmul.f32.gmra.mxu0 %v609
    %v628 = vpop.f32.mrf.mxu0
    %v629 = vadd.f32 0.0, %v628
    %630 = vdwg.mxu0
    %v631 = vsel %vm552, %v581, 0
    %633 = vmatpush.msra.mxu0 0.0
    %634 = vmatpush.msra.mxu0 0.0
    %635 = vmatpush.msra.mxu0 0.0
    %636 = vmatpush.msra.mxu0 0.0
    %637 = vmatpush.msra.mxu0 0.0
    %638 = vmatpush.msra.mxu0 0.0
    %639 = vmatpush.msra.mxu0 0.0
    %640 = vmatpush.msra.mxu0 0.0
    %641 = vmatpush.msra.mxu0 0.0
    %642 = vmatpush.msra.mxu0 0.0
    %643 = vmatpush.msra.mxu0 0.0
    %644 = vmatpush.msra.mxu0 0.0
    %645 = vmatpush.msra.mxu0 0.0
    %646 = vmatpush.msra.mxu0 0.0
    %647 = vmatpush.msra.mxu0 0.0
    %648 = vmatpush.msra.mxu0 %v148
    %649 = vmatmul.f32.gmra.mxu0 %v631
    %v650 = vpop.f32.mrf.mxu0
    %v651 = vadd.f32 0.0, %v650
    %652 = vdwg.mxu0
    %v653 = vsel %vm552, %v582, 0
    %655 = vmatpush.msra.mxu0 0.0
    %656 = vmatpush.msra.mxu0 0.0
    %657 = vmatpush.msra.mxu0 0.0
    %658 = vmatpush.msra.mxu0 0.0
    %659 = vmatpush.msra.mxu0 0.0
    %660 = vmatpush.msra.mxu0 0.0
    %661 = vmatpush.msra.mxu0 0.0
    %662 = vmatpush.msra.mxu0 0.0
    %663 = vmatpush.msra.mxu0 0.0
    %664 = vmatpush.msra.mxu0 0.0
    %665 = vmatpush.msra.mxu0 0.0
    %666 = vmatpush.msra.mxu0 0.0
    %667 = vmatpush.msra.mxu0 0.0
    %668 = vmatpush.msra.mxu0 0.0
    %669 = vmatpush.msra.mxu0 0.0
    %670 = vmatpush.msra.mxu0 %v149
    %671 = vmatmul.f32.gmra.mxu0 %v653
    %v672 = vpop.f32.mrf.mxu0
    %v673 = vadd.f32 0.0, %v672
    %674 = vdwg.mxu0
    %v675 = vsel %vm552, %v583, 0
    %677 = vmatpush.msra.mxu0 0.0
    %678 = vmatpush.msra.mxu0 0.0
    %679 = vmatpush.msra.mxu0 0.0
    %680 = vmatpush.msra.mxu0 0.0
    %681 = vmatpush.msra.mxu0 0.0
    %682 = vmatpush.msra.mxu0 0.0
    %683 = vmatpush.msra.mxu0 0.0
    %684 = vmatpush.msra.mxu0 0.0
    %685 = vmatpush.msra.mxu0 0.0
    %686 = vmatpush.msra.mxu0 0.0
    %687 = vmatpush.msra.mxu0 0.0
    %688 = vmatpush.msra.mxu0 0.0
    %689 = vmatpush.msra.mxu0 0.0
    %690 = vmatpush.msra.mxu0 0.0
    %691 = vmatpush.msra.mxu0 0.0
    %692 = vmatpush.msra.mxu0 %v150
    %693 = vmatmul.f32.gmra.mxu0 %v675
    %v694 = vpop.f32.mrf.mxu0
    %v695 = vadd.f32 0.0, %v694
    %696 = vdwg.mxu0
    %v697 = vsel %vm552, %v584, 0
    %699 = vmatpush.msra.mxu0 0.0
    %700 = vmatpush.msra.mxu0 0.0
    %701 = vmatpush.msra.mxu0 0.0
    %702 = vmatpush.msra.mxu0 0.0
    %703 = vmatpush.msra.mxu0 0.0
    %704 = vmatpush.msra.mxu0 0.0
    %705 = vmatpush.msra.mxu0 0.0
    %706 = vmatpush.msra.mxu0 0.0
    %707 = vmatpush.msra.mxu0 0.0
    %708 = vmatpush.msra.mxu0 0.0
    %709 = vmatpush.msra.mxu0 0.0
    %710 = vmatpush.msra.mxu0 0.0
    %711 = vmatpush.msra.mxu0 0.0
    %712 = vmatpush.msra.mxu0 0.0
    %713 = vmatpush.msra.mxu0 0.0
    %714 = vmatpush.msra.mxu0 %v151
    %715 = vmatmul.f32.gmra.mxu0 %v697
    %v716 = vpop.f32.mrf.mxu0
    %v717 = vadd.f32 0.0, %v716
    %718 = vdwg.mxu0
    %v719 = vsel %vm552, %v585, 0
    %721 = vmatpush.msra.mxu0 0.0
    %722 = vmatpush.msra.mxu0 0.0
    %723 = vmatpush.msra.mxu0 0.0
    %724 = vmatpush.msra.mxu0 0.0
    %725 = vmatpush.msra.mxu0 0.0
    %726 = vmatpush.msra.mxu0 0.0
    %727 = vmatpush.msra.mxu0 0.0
    %728 = vmatpush.msra.mxu0 0.0
    %729 = vmatpush.msra.mxu0 0.0
    %730 = vmatpush.msra.mxu0 0.0
    %731 = vmatpush.msra.mxu0 0.0
    %732 = vmatpush.msra.mxu0 0.0
    %733 = vmatpush.msra.mxu0 0.0
    %734 = vmatpush.msra.mxu0 0.0
    %735 = vmatpush.msra.mxu0 0.0
    %736 = vmatpush.msra.mxu0 %v152
    %737 = vmatmul.f32.gmra.mxu0 %v719
    %v738 = vpop.f32.mrf.mxu0
    %v739 = vadd.f32 0.0, %v738
    %740 = vdwg.mxu0
    %v741 = vsel %vm552, %v586, 0
    %743 = vmatpush.msra.mxu0 0.0
    %744 = vmatpush.msra.mxu0 0.0
    %745 = vmatpush.msra.mxu0 0.0
    %746 = vmatpush.msra.mxu0 0.0
    %747 = vmatpush.msra.mxu0 0.0
    %748 = vmatpush.msra.mxu0 0.0
    %749 = vmatpush.msra.mxu0 0.0
    %750 = vmatpush.msra.mxu0 0.0
    %751 = vmatpush.msra.mxu0 0.0
    %752 = vmatpush.msra.mxu0 0.0
    %753 = vmatpush.msra.mxu0 0.0
    %754 = vmatpush.msra.mxu0 0.0
    %755 = vmatpush.msra.mxu0 0.0
    %756 = vmatpush.msra.mxu0 0.0
    %757 = vmatpush.msra.mxu0 0.0
    %758 = vmatpush.msra.mxu0 %v153
    %759 = vmatmul.f32.gmra.mxu0 %v741
    %v760 = vpop.f32.mrf.mxu0
    %v761 = vadd.f32 0.0, %v760
    %762 = vdwg.mxu0
    %763 = vmatpush.msra.mxu0 0.0
    %764 = vmatpush.msra.mxu0 0.0
    %765 = vmatpush.msra.mxu0 0.0
    %766 = vmatpush.msra.mxu0 0.0
    %767 = vmatpush.msra.mxu0 0.0
    %768 = vmatpush.msra.mxu0 0.0
    %769 = vmatpush.msra.mxu0 0.0
    %770 = vmatpush.msra.mxu0 0.0
    %771 = vmatpush.msra.mxu0 0.0
    %772 = vmatpush.msra.mxu0 0.0
    %773 = vmatpush.msra.mxu0 0.0
    %774 = vmatpush.msra.mxu0 0.0
    %775 = vmatpush.msra.mxu0 0.0
    %776 = vmatpush.msra.mxu0 0.0
    %777 = vmatpush.msra.mxu0 0.0
    %778 = vmatpush.msra.mxu0 %v162
    %779 = vmatmul.f32.gmra.mxu0 %v587
    %v780 = vpop.f32.mrf.mxu0
    %v781 = vadd.f32 0.0, %v780
    %782 = vdwg.mxu0
    %783 = vmatpush.msra.mxu0 0.0
    %784 = vmatpush.msra.mxu0 0.0
    %785 = vmatpush.msra.mxu0 0.0
    %786 = vmatpush.msra.mxu0 0.0
    %787 = vmatpush.msra.mxu0 0.0
    %788 = vmatpush.msra.mxu0 0.0
    %789 = vmatpush.msra.mxu0 0.0
    %790 = vmatpush.msra.mxu0 0.0
    %791 = vmatpush.msra.mxu0 0.0
    %792 = vmatpush.msra.mxu0 0.0
    %793 = vmatpush.msra.mxu0 0.0
    %794 = vmatpush.msra.mxu0 0.0
    %795 = vmatpush.msra.mxu0 0.0
    %796 = vmatpush.msra.mxu0 0.0
    %797 = vmatpush.msra.mxu0 0.0
    %798 = vmatpush.msra.mxu0 %v163
    %799 = vmatmul.f32.gmra.mxu0 %v609
    %v800 = vpop.f32.mrf.mxu0
    %v801 = vadd.f32 0.0, %v800
    %802 = vdwg.mxu0
    %803 = vmatpush.msra.mxu0 0.0
    %804 = vmatpush.msra.mxu0 0.0
    %805 = vmatpush.msra.mxu0 0.0
    %806 = vmatpush.msra.mxu0 0.0
    %807 = vmatpush.msra.mxu0 0.0
    %808 = vmatpush.msra.mxu0 0.0
    %809 = vmatpush.msra.mxu0 0.0
    %810 = vmatpush.msra.mxu0 0.0
    %811 = vmatpush.msra.mxu0 0.0
    %812 = vmatpush.msra.mxu0 0.0
    %813 = vmatpush.msra.mxu0 0.0
    %814 = vmatpush.msra.mxu0 0.0
    %815 = vmatpush.msra.mxu0 0.0
    %816 = vmatpush.msra.mxu0 0.0
    %817 = vmatpush.msra.mxu0 0.0
    %818 = vmatpush.msra.mxu0 %v164
    %819 = vmatmul.f32.gmra.mxu0 %v631
    %v820 = vpop.f32.mrf.mxu0
    %v821 = vadd.f32 0.0, %v820
    %822 = vdwg.mxu0
    %823 = vmatpush.msra.mxu0 0.0
    %824 = vmatpush.msra.mxu0 0.0
    %825 = vmatpush.msra.mxu0 0.0
    %826 = vmatpush.msra.mxu0 0.0
    %827 = vmatpush.msra.mxu0 0.0
    %828 = vmatpush.msra.mxu0 0.0
    %829 = vmatpush.msra.mxu0 0.0
    %830 = vmatpush.msra.mxu0 0.0
    %831 = vmatpush.msra.mxu0 0.0
    %832 = vmatpush.msra.mxu0 0.0
    %833 = vmatpush.msra.mxu0 0.0
    %834 = vmatpush.msra.mxu0 0.0
    %835 = vmatpush.msra.mxu0 0.0
    %836 = vmatpush.msra.mxu0 0.0
    %837 = vmatpush.msra.mxu0 0.0
    %838 = vmatpush.msra.mxu0 %v165
    %839 = vmatmul.f32.gmra.mxu0 %v653
    %v840 = vpop.f32.mrf.mxu0
    %v841 = vadd.f32 0.0, %v840
    %842 = vdwg.mxu0
    %843 = vmatpush.msra.mxu0 0.0
    %844 = vmatpush.msra.mxu0 0.0
    %845 = vmatpush.msra.mxu0 0.0
    %846 = vmatpush.msra.mxu0 0.0
    %847 = vmatpush.msra.mxu0 0.0
    %848 = vmatpush.msra.mxu0 0.0
    %849 = vmatpush.msra.mxu0 0.0
    %850 = vmatpush.msra.mxu0 0.0
    %851 = vmatpush.msra.mxu0 0.0
    %852 = vmatpush.msra.mxu0 0.0
    %853 = vmatpush.msra.mxu0 0.0
    %854 = vmatpush.msra.mxu0 0.0
    %855 = vmatpush.msra.mxu0 0.0
    %856 = vmatpush.msra.mxu0 0.0
    %857 = vmatpush.msra.mxu0 0.0
    %858 = vmatpush.msra.mxu0 %v166
    %859 = vmatmul.f32.gmra.mxu0 %v675
    %v860 = vpop.f32.mrf.mxu0
    %v861 = vadd.f32 0.0, %v860
    %862 = vdwg.mxu0
    %863 = vmatpush.msra.mxu0 0.0
    %864 = vmatpush.msra.mxu0 0.0
    %865 = vmatpush.msra.mxu0 0.0
    %866 = vmatpush.msra.mxu0 0.0
    %867 = vmatpush.msra.mxu0 0.0
    %868 = vmatpush.msra.mxu0 0.0
    %869 = vmatpush.msra.mxu0 0.0
    %870 = vmatpush.msra.mxu0 0.0
    %871 = vmatpush.msra.mxu0 0.0
    %872 = vmatpush.msra.mxu0 0.0
    %873 = vmatpush.msra.mxu0 0.0
    %874 = vmatpush.msra.mxu0 0.0
    %875 = vmatpush.msra.mxu0 0.0
    %876 = vmatpush.msra.mxu0 0.0
    %877 = vmatpush.msra.mxu0 0.0
    %878 = vmatpush.msra.mxu0 %v167
    %879 = vmatmul.f32.gmra.mxu0 %v697
    %v880 = vpop.f32.mrf.mxu0
    %v881 = vadd.f32 0.0, %v880
    %882 = vdwg.mxu0
    %883 = vmatpush.msra.mxu0 0.0
    %884 = vmatpush.msra.mxu0 0.0
    %885 = vmatpush.msra.mxu0 0.0
    %886 = vmatpush.msra.mxu0 0.0
    %887 = vmatpush.msra.mxu0 0.0
    %888 = vmatpush.msra.mxu0 0.0
    %889 = vmatpush.msra.mxu0 0.0
    %890 = vmatpush.msra.mxu0 0.0
    %891 = vmatpush.msra.mxu0 0.0
    %892 = vmatpush.msra.mxu0 0.0
    %893 = vmatpush.msra.mxu0 0.0
    %894 = vmatpush.msra.mxu0 0.0
    %895 = vmatpush.msra.mxu0 0.0
    %896 = vmatpush.msra.mxu0 0.0
    %897 = vmatpush.msra.mxu0 0.0
    %898 = vmatpush.msra.mxu0 %v168
    %899 = vmatmul.f32.gmra.mxu0 %v719
    %v900 = vpop.f32.mrf.mxu0
    %v901 = vadd.f32 0.0, %v900
    %902 = vdwg.mxu0
    %903 = vmatpush.msra.mxu0 0.0
    %904 = vmatpush.msra.mxu0 0.0
    %905 = vmatpush.msra.mxu0 0.0
    %906 = vmatpush.msra.mxu0 0.0
    %907 = vmatpush.msra.mxu0 0.0
    %908 = vmatpush.msra.mxu0 0.0
    %909 = vmatpush.msra.mxu0 0.0
    %910 = vmatpush.msra.mxu0 0.0
    %911 = vmatpush.msra.mxu0 0.0
    %912 = vmatpush.msra.mxu0 0.0
    %913 = vmatpush.msra.mxu0 0.0
    %914 = vmatpush.msra.mxu0 0.0
    %915 = vmatpush.msra.mxu0 0.0
    %916 = vmatpush.msra.mxu0 0.0
    %917 = vmatpush.msra.mxu0 0.0
    %918 = vmatpush.msra.mxu0 %v169
    %919 = vmatmul.f32.gmra.mxu0 %v741
    %v920 = vpop.f32.mrf.mxu0
    %v921 = vadd.f32 0.0, %v920
    %922 = vdwg.mxu0
    %v923 = vld [vmem:[#allocation9] sm:$0xff]
    %v924 = vld [vmem:[#allocation9 + $0x8] sm:$0xff]
    %v925 = vld [vmem:[#allocation9 + $0x10] sm:$0xff]
    %v926 = vld [vmem:[#allocation9 + $0x18] sm:$0xff]
    %v927 = vld [vmem:[#allocation9 + $0x20] sm:$0xff]
    %v928 = vld [vmem:[#allocation9 + $0x28] sm:$0xff]
    %v929 = vld [vmem:[#allocation9 + $0x30] sm:$0xff]
    %v930 = vld [vmem:[#allocation9 + $0x38] sm:$0xff]
    %v931 = vld [vmem:[#allocation9 + $0x40] sm:$0xff]
    %v932 = vld [vmem:[#allocation9 + $0x48] sm:$0xff]
    %v933 = vld [vmem:[#allocation9 + $0x50] sm:$0xff]
    %v934 = vld [vmem:[#allocation9 + $0x58] sm:$0xff]
    %v935 = vld [vmem:[#allocation9 + $0x60] sm:$0xff]
    %v936 = vld [vmem:[#allocation9 + $0x68] sm:$0xff]
    %v937 = vld [vmem:[#allocation9 + $0x70] sm:$0xff]
    %v938 = vld [vmem:[#allocation9 + $0x78] sm:$0xff]
    %v939 = vld [vmem:[#allocation11] sm:$0xff]
    %v940 = vld [vmem:[#allocation11 + $0x8] sm:$0xff]
    %v941 = vld [vmem:[#allocation11 + $0x10] sm:$0xff]
    %v942 = vld [vmem:[#allocation11 + $0x18] sm:$0xff]
    %v943 = vld [vmem:[#allocation11 + $0x20] sm:$0xff]
    %v944 = vld [vmem:[#allocation11 + $0x28] sm:$0xff]
    %v945 = vld [vmem:[#allocation11 + $0x30] sm:$0xff]
    %v946 = vld [vmem:[#allocation11 + $0x38] sm:$0xff]
    %v947 = vld [vmem:[#allocation11 + $0x40] sm:$0xff]
    %v948 = vld [vmem:[#allocation11 + $0x48] sm:$0xff]
    %v949 = vld [vmem:[#allocation11 + $0x50] sm:$0xff]
    %v950 = vld [vmem:[#allocation11 + $0x58] sm:$0xff]
    %v951 = vld [vmem:[#allocation11 + $0x60] sm:$0xff]
    %v952 = vld [vmem:[#allocation11 + $0x68] sm:$0xff]
    %v953 = vld [vmem:[#allocation11 + $0x70] sm:$0xff]
    %v954 = vld [vmem:[#allocation11 + $0x78] sm:$0xff]
    %v963 = vrot.slane %v801, 7
    %v964 = vsel %vm530, %v963, %v781
    %v965 = vrot.slane %v821, 6
    %v966 = vsel %vm533, %v965, %v964
    %v967 = vrot.slane %v841, 5
    %v968 = vsel %vm536, %v967, %v966
    %v969 = vrot.slane %v861, 4
    %v970 = vsel %vm539, %v969, %v968
    %v971 = vrot.slane %v881, 3
    %v972 = vsel %vm542, %v971, %v970
    %v973 = vrot.slane %v901, 2
    %v974 = vsel %vm545, %v973, %v972
    %v975 = vrot.slane %v921, 1
    %v976 = vsel %vm548, %v975, %v974
    %978 = vmatpush.msra.mxu0 %v954
    %979 = vmatpush.msra.mxu0 %v953
    %980 = vmatpush.msra.mxu0 %v952
    %981 = vmatpush.msra.mxu0 %v951
    %982 = vmatpush.msra.mxu0 %v950
    %983 = vmatpush.msra.mxu0 %v949
    %984 = vmatpush.msra.mxu0 %v948
    %985 = vmatpush.msra.mxu0 %v947
    %986 = vmatpush.msra.mxu0 %v946
    %987 = vmatpush.msra.mxu0 %v945
    %988 = vmatpush.msra.mxu0 %v944
    %989 = vmatpush.msra.mxu0 %v943
    %990 = vmatpush.msra.mxu0 %v942
    %991 = vmatpush.msra.mxu0 %v941
    %992 = vmatpush.msra.mxu0 %v940
    %993 = vmatpush.msra.mxu0 %v939
    %994 = vmatmul.f32.gmra.mxu0 %v976
    %v995 = vpop.f32.mrf.mxu0
    %v996 = vadd.f32 0.0, %v995
    %997 = vdwg.mxu0
    %v1006 = vrot.slane %v629, 7
    %v1007 = vsel %vm530, %v1006, %v607
    %v1008 = vrot.slane %v651, 6
    %v1009 = vsel %vm533, %v1008, %v1007
    %v1010 = vrot.slane %v673, 5
    %v1011 = vsel %vm536, %v1010, %v1009
    %v1012 = vrot.slane %v695, 4
    %v1013 = vsel %vm539, %v1012, %v1011
    %v1014 = vrot.slane %v717, 3
    %v1015 = vsel %vm542, %v1014, %v1013
    %v1016 = vrot.slane %v739, 2
    %v1017 = vsel %vm545, %v1016, %v1015
    %v1018 = vrot.slane %v761, 1
    %v1019 = vsel %vm548, %v1018, %v1017
    %1021 = vmatpush.msra.mxu0 %v938
    %1022 = vmatpush.msra.mxu0 %v937
    %1023 = vmatpush.msra.mxu0 %v936
    %1024 = vmatpush.msra.mxu0 %v935
    %1025 = vmatpush.msra.mxu0 %v934
    %1026 = vmatpush.msra.mxu0 %v933
    %1027 = vmatpush.msra.mxu0 %v932
    %1028 = vmatpush.msra.mxu0 %v931
    %1029 = vmatpush.msra.mxu0 %v930
    %1030 = vmatpush.msra.mxu0 %v929
    %1031 = vmatpush.msra.mxu0 %v928
    %1032 = vmatpush.msra.mxu0 %v927
    %1033 = vmatpush.msra.mxu0 %v926
    %1034 = vmatpush.msra.mxu0 %v925
    %1035 = vmatpush.msra.mxu0 %v924
    %1036 = vmatpush.msra.mxu0 %v923
    %1037 = vmatmul.f32.gmra.mxu0 %v1019
    %v1038 = vpop.f32.mrf.mxu0
    %v1039 = vadd.f32 %v996, %v1038
    %1040 = vdwg.mxu0
    %v1041 = vld [vmem:[%s6] sm:$0x1]
    %v1043 = vperm.slane %v1041, 0
    %v1045 = vadd.f32 %v1039, %v1043
    %v1046 = vmax.f32 %v1045, 0.0
    %v1047 = vld [vmem:[#allocation12] sm:$0xff]
    %v1048 = vld [vmem:[#allocation12 + $0x8] sm:$0xff]
    %v1049 = vld [vmem:[#allocation12 + $0x10] sm:$0xff]
    %v1050 = vld [vmem:[#allocation12 + $0x18] sm:$0xff]
    %v1051 = vld [vmem:[#allocation12 + $0x20] sm:$0xff]
    %v1052 = vld [vmem:[#allocation12 + $0x28] sm:$0xff]
    %v1053 = vld [vmem:[#allocation12 + $0x30] sm:$0xff]
    %v1054 = vld [vmem:[#allocation12 + $0x38] sm:$0xff]
    %v1055 = vld [vmem:[#allocation12 + $0x40] sm:$0xff]
    %v1056 = vld [vmem:[#allocation12 + $0x48] sm:$0xff]
    %v1057 = vld [vmem:[#allocation12 + $0x50] sm:$0xff]
    %v1058 = vld [vmem:[#allocation12 + $0x58] sm:$0xff]
    %v1059 = vld [vmem:[#allocation12 + $0x60] sm:$0xff]
    %v1060 = vld [vmem:[#allocation12 + $0x68] sm:$0xff]
    %v1061 = vld [vmem:[#allocation12 + $0x70] sm:$0xff]
    %v1062 = vld [vmem:[#allocation12 + $0x78] sm:$0xff]
    %v1063 = vld [vmem:[%s8] sm:$0x1]
    %v1065 = vperm.slane %v1063, 0
    %1067 = vmatpush.msra.mxu0 %v1062
    %1068 = vmatpush.msra.mxu0 %v1061
    %1069 = vmatpush.msra.mxu0 %v1060
    %1070 = vmatpush.msra.mxu0 %v1059
    %1071 = vmatpush.msra.mxu0 %v1058
    %1072 = vmatpush.msra.mxu0 %v1057
    %1073 = vmatpush.msra.mxu0 %v1056
    %1074 = vmatpush.msra.mxu0 %v1055
    %1075 = vmatpush.msra.mxu0 %v1054
    %1076 = vmatpush.msra.mxu0 %v1053
    %1077 = vmatpush.msra.mxu0 %v1052
    %1078 = vmatpush.msra.mxu0 %v1051
    %1079 = vmatpush.msra.mxu0 %v1050
    %1080 = vmatpush.msra.mxu0 %v1049
    %1081 = vmatpush.msra.mxu0 %v1048
    %1082 = vmatpush.msra.mxu0 %v1047
    %1083 = vmatmul.f32.gmra.mxu0 %v1046
    %v1084 = vpop.f32.mrf.mxu0
    %v1085 = vadd.f32 %v1065, %v1084
    %1086 = vdwg.mxu0
    %1087 = vst [vmem:[#allocation14] sm:$0xff] %v1085
    // Predicated region
    $region68: #{tpu_custom_call.1} parent=1 // pred_check
      _
    $region69: #{tpu_custom_call.1} parent=1 // pred_check_branch
      %1089 = sbr.rel (0) target = $region71
    $region70: #{tpu_custom_call.1} parent=1 // pred_region
      %1091 = vsyncadd [#allocation8], 0
      %s1093 = sshll.u32 [#allocation14], 4
      %s1094 = int_to_ptr.vmem [resolvable:$true] %s1093
      %s1095 = sshll.u32 %s10, 4
      %s1096 = int_to_ptr.hbm [resolvable:$true] %s1095
      %1098 = dma.vmem_to_hbm [thread:$0]  %s1094, 128, %s1096, [#allocation8]
    $region71: #{tpu_custom_call.1} parent=1 // pred_fallthru
      _
    // Predicated region
    $region72: #{tpu_custom_call.1} parent=1 // pred_check
      _
    $region73: #{tpu_custom_call.1} parent=1 // pred_check_branch
      %1100 = sbr.rel (0) target = $region75
    $region74: #{tpu_custom_call.1} parent=1 // pred_region
      %1102 = vsyncadd [#allocation16], 0
      %s1104 = sshll.u32 [#allocation15], 4
      %s1105 = int_to_ptr.vmem [resolvable:$true] %s1104
      %s1106 = sshll.u32 %s11, 4
      %s1107 = int_to_ptr.hbm [resolvable:$true] %s1106
      %1109 = dma.vmem_to_hbm [thread:$0]  %s1105, 128, %s1107, [#allocation16]
    $region75: #{tpu_custom_call.1} parent=1 // pred_fallthru
      _
    // Predicated region
    $region76: #{tpu_custom_call.1} parent=1 // pred_check
      _
    $region77: #{tpu_custom_call.1} parent=1 // pred_check_branch
      %1111 = sbr.rel (0) target = $region79
    $region78: #{tpu_custom_call.1} parent=1 // pred_region
      %1113 = dma.done [#allocation8], 128
    $region79: #{tpu_custom_call.1} parent=1 // pred_fallthru
      _
    // Predicated region
    $region80: #{tpu_custom_call.1} parent=1 // pred_check
      _
    $region81: #{tpu_custom_call.1} parent=1 // pred_check_branch
      %1115 = sbr.rel (0) target = $region83
    $region82: #{tpu_custom_call.1} parent=1 // pred_region
      %1117 = dma.done [#allocation16], 128
    $region83: #{tpu_custom_call.1} parent=1 // pred_fallthru
      _
    %1118 = vsyncpa [#allocation7], 1
    %1119 = vsyncpa [#allocation10], 1
    %1120 = vsyncpa [#allocation13], 1
    %1121 = vsyncpa [#allocation8], 1
    %1122 = vsyncpa [#allocation16], 1
  %1123 = vsyncmov [#allocation3]
  %s1124 = vpop.sfrf %1123
  %p1125 = scmp.eq.s32.totalorder %s1124, 0
  %p1126 = pneg %p1125
  %1128 = shalt.err (%p1126)

</llo_original>
